<compile_context>
chip_gen: v5e
topology: v5e:2x2
jax: 0.10.0
libtpu: 0.0.40
codegen_flags: <defaults>
</compile_context>

<pallas_src>
import functools

import jax
import jax.numpy as jnp
from jax.experimental import pallas as pl
from jax.experimental.pallas import tpu as pltpu

_BN_EPS = 1e-5
_PARAM_DTYPE = jnp.bfloat16   # MXU-native weight dtype; accumulation stays f32


def _round_up(x, m):
    return ((x + m - 1) // m) * m


def _pad_to(a, shape):
    pads = [(0, t - s) for s, t in zip(a.shape, shape)]
    return jnp.pad(a, pads)


# ----------------------------------------------------------------------------
# Fused forward kernel: the entire network in one kernel body (9 matmuls).
# ----------------------------------------------------------------------------
def _fused_forward_kernel(
    x_ref,
    w_e1, s_e1, w_e2, s_e2, w_e3, s_e3,
    w_mu, s_mu,
    w_z, s_z,                 # fused: dec1 (lanes 0:128) | task-hidden (128:256)
    w_d2, s_d2, w_d3, s_d3, w_d4, s_d4,
    w_h, s_h,                 # block-diagonal logits head
    xr_ref, zl_ref,
):
    def dense(h, w_ref, s_ref, relu):
        # bf16 MXU matmul, f32 accumulate, f32 epilogue (shift + optional ReLU).
        y = jnp.dot(h.astype(w_ref.dtype), w_ref[...],
                    preferred_element_type=jnp.float32)
        y = y + s_ref[...]                    # folded bias / BatchNorm shift
        if relu:
            y = jnp.maximum(y, 0.0)
        return y

    x = x_ref[...]
    # encoder (Dropout = identity in eval mode)
    h = dense(x, w_e1, s_e1, True)
    h = dense(h, w_e2, s_e2, True)
    h = dense(h, w_e3, s_e3, True)
    # latent (padded lanes beyond latent_dim are exactly zero)
    z = dense(h, w_mu, s_mu, False)
    # fused z-consumers: decoder layer 1 and both task-head hidden layers
    zf = dense(z, w_z, s_z, True)             # (block_b, 256)
    d = zf[:, :128]                           # dec1 output (128-lane aligned slice)
    t = zf[:, 128:]                           # task hidden (t1a | t2a)
    # decoder
    d = dense(d, w_d2, s_d2, True)
    d = dense(d, w_d3, s_d3, True)
    xr = dense(d, w_d4, s_d4, False)
    # block-diagonal output head: cols [:nc]=logits1, [nc:nc+5]=logits2
    lg = dense(t, w_h, s_h, False)

    lat_p = z.shape[1]
    xr_ref[...] = xr.astype(xr_ref.dtype)
    zl_ref[:, :lat_p] = z.astype(zl_ref.dtype)
    zl_ref[:, lat_p:] = lg.astype(zl_ref.dtype)


# ----------------------------------------------------------------------------
# Parameter construction (deterministic, synthetic) + packing
# ----------------------------------------------------------------------------
def _make_linear(key, in_dim, out_dim):
    kw, kb = jax.random.split(key)
    bound = 1.0 / jnp.sqrt(in_dim)
    w_t = jax.random.uniform(kw, (in_dim, out_dim), jnp.float32, -bound, bound)
    b = jax.random.uniform(kb, (out_dim,), jnp.float32, -bound, bound)
    return {"w": w_t, "b": b}


def _make_bn(key, dim):
    kg, kb, km, kv = jax.random.split(key, 4)
    return {
        "gamma": 1.0 + 0.1 * jax.random.normal(kg, (dim,), jnp.float32),
        "beta": 0.1 * jax.random.normal(kb, (dim,), jnp.float32),
        "mean": 0.1 * jax.random.normal(km, (dim,), jnp.float32),
        "var": 1.0 + 0.1 * jax.random.uniform(kv, (dim,), jnp.float32),
    }


def init_params(input_dim, latent_dim, num_classes, seed=42):
    keys = jax.random.split(jax.random.PRNGKey(seed), 32)
    k = iter(keys)
    p = {}
    p["enc1"] = (_make_linear(next(k), input_dim, 512), _make_bn(next(k), 512))
    p["enc2"] = (_make_linear(next(k), 512, 256), _make_bn(next(k), 256))
    p["enc3"] = (_make_linear(next(k), 256, 128), _make_bn(next(k), 128))
    p["fc_mu"] = (_make_linear(next(k), 128, latent_dim), None)
    p["dec1"] = (_make_linear(next(k), latent_dim, 128), _make_bn(next(k), 128))
    p["dec2"] = (_make_linear(next(k), 128, 256), _make_bn(next(k), 256))
    p["dec3"] = (_make_linear(next(k), 256, 512), _make_bn(next(k), 512))
    p["dec4"] = (_make_linear(next(k), 512, input_dim), None)
    p["t1a"] = (_make_linear(next(k), latent_dim, 64), None)
    p["t1b"] = (_make_linear(next(k), 64, num_classes), None)
    p["t2a"] = (_make_linear(next(k), latent_dim, 64), None)
    p["t2b"] = (_make_linear(next(k), 64, 5), None)
    return p


def _fold(lin, bn):
    """Fold Linear(+optional eval-mode BN) into (w_scaled, shift)."""
    w, b = lin["w"], lin["b"]
    if bn is None:
        return w, b
    s = bn["gamma"] / jnp.sqrt(bn["var"] + _BN_EPS)
    return w * s[None, :], (b - bn["mean"]) * s + bn["beta"]


def pack_params(p, input_dim, latent_dim, num_classes):
    """Fold BN, cast weights to bf16, pad out-dims to 128, fuse heads. Once."""
    d_p = _round_up(input_dim, 128)
    lat_p = _round_up(latent_dim, 128)
    h_p = _round_up(num_classes + 5, 128)

    tensors = []

    def add(w, s):
        tensors.append(w.astype(_PARAM_DTYPE))
        tensors.append(s.astype(jnp.float32)[None, :])   # shifts stay f32

    w, s = _fold(*p["enc1"]); add(w, s)                                 # K=32
    w, s = _fold(*p["enc2"]); add(w, s)
    w, s = _fold(*p["enc3"]); add(w, s)
    w, s = _fold(*p["fc_mu"]); add(_pad_to(w, (128, lat_p)), _pad_to(s, (lat_p,)))

    # fused z-consumers: dec1 || (t1a | t2a) -> one (lat_p, 256) matmul
    wd1, sd1 = _fold(*p["dec1"])
    w1, b1 = _fold(*p["t1a"])
    w2, b2 = _fold(*p["t2a"])
    wz = jnp.concatenate([wd1, w1, w2], axis=1)          # (latent, 256)
    sz = jnp.concatenate([sd1, b1, b2], axis=0)          # (256,)
    add(_pad_to(wz, (lat_p, 256)), sz)

    w, s = _fold(*p["dec2"]); add(w, s)
    w, s = _fold(*p["dec3"]); add(w, s)
    w, s = _fold(*p["dec4"]); add(_pad_to(w, (512, d_p)), _pad_to(s, (d_p,)))

    # block-diagonal output head: cols [:nc] = logits1, [nc:nc+5] = logits2
    w1b, b1b = _fold(*p["t1b"])
    w2b, b2b = _fold(*p["t2b"])
    wh = jnp.zeros((128, h_p), jnp.float32)
    wh = wh.at[:64, :num_classes].set(w1b)
    wh = wh.at[64:128, num_classes:num_classes + 5].set(w2b)
    sh = jnp.zeros((h_p,), jnp.float32)
    sh = sh.at[:num_classes].set(b1b)
    sh = sh.at[num_classes:num_classes + 5].set(b2b)
    add(wh, sh)

    return tuple(tensors)


# ----------------------------------------------------------------------------
# Batch tiling: tiles up to 512 rows; >= 2 tiles when B > 256 (v7x megacore);
# block chosen so the padded tail stays small.
# ----------------------------------------------------------------------------
def _batch_tiling(B):
    if B <= 256:
        return _round_up(max(B, 1), 8), 1
    nb = max(2, -(-B // 512))
    block_b = _round_up(-(-B // nb), 8)
    return block_b, nb


# ----------------------------------------------------------------------------
# Forward pass: single fused pallas_call, gridded over the batch.
# ----------------------------------------------------------------------------
def dual_output_autoencoder_forward(x, packed, *, input_dim, latent_dim,
                                    num_classes):
    B = x.shape[0]
    d_p = _round_up(input_dim, 128)
    lat_p = _round_up(latent_dim, 128)
    h_p = _round_up(num_classes + 5, 128)

    block_b, nb = _batch_tiling(B)
    b_p = block_b * nb

    x_in = x.astype(jnp.float32)
    if b_p != B:
        x_in = jnp.pad(x_in, ((0, b_p - B), (0, 0)))      # batch-only padding

    # x: full (narrow) minor dim is a legal block -> no 128-lane padded copy.
    x_spec = pl.BlockSpec((block_b, input_dim), lambda i: (i, 0))
    # weights/shifts: whole-array VMEM residents, no pipelining / double-buffer.
    w_specs = [pl.BlockSpec(memory_space=pltpu.MemorySpace.VMEM) for _ in packed]
    out_specs = [
        pl.BlockSpec((block_b, d_p), lambda i: (i, 0)),            # x_recon slab
        pl.BlockSpec((block_b, lat_p + h_p), lambda i: (i, 0)),    # z | logits slab
    ]
    out_shape = [
        jax.ShapeDtypeStruct((b_p, d_p), jnp.float32),
        jax.ShapeDtypeStruct((b_p, lat_p + h_p), jnp.float32),
    ]

    layer_dims = [(input_dim, 512), (512, 256), (256, 128), (128, lat_p),
                  (lat_p, 256), (128, 256), (256, 512), (512, d_p), (128, h_p)]
    flops = 2 * b_p * sum(k * n for k, n in layer_dims)
    param_bytes = sum(int(t.size) * t.dtype.itemsize for t in packed)
    bytes_accessed = (4 * b_p * input_dim + param_bytes
                      + 4 * b_p * (d_p + lat_p + h_p))

    xr_p, zl_p = pl.pallas_call(
        _fused_forward_kernel,
        out_shape=out_shape,
        grid=(nb,),
        in_specs=[x_spec] + w_specs,
        out_specs=out_specs,
        compiler_params=pltpu.CompilerParams(
            dimension_semantics=("parallel",)),
        cost_estimate=pl.CostEstimate(flops=flops, transcendentals=0,
                                      bytes_accessed=bytes_accessed),
    )(x_in, *packed)

    x_recon = xr_p[:B, :input_dim]
    z = zl_p[:B, :latent_dim]
    logits1 = zl_p[:B, lat_p:lat_p + num_classes]
    logits2 = zl_p[:B, lat_p + num_classes:lat_p + num_classes + 5]
    return x_recon, logits1, logits2, z


# ----------------------------------------------------------------------------
# Pure-JAX references (eval-mode semantics) for correctness checks
# ----------------------------------------------------------------------------
def _layer_ref(x, params, *, relu):
    lin, bn = params
    y = x @ lin["w"] + lin["b"]
    if bn is not None:
        y = (y - bn["mean"]) / jnp.sqrt(bn["var"] + _BN_EPS) * bn["gamma"] + bn["beta"]
    if relu:
        y = jnp.maximum(y, 0.0)
    return y


def _forward_generic(x, p, layer):
    h = layer(x, p["enc1"], relu=True)
    h = layer(h, p["enc2"], relu=True)
    h = layer(h, p["enc3"], relu=True)
    z = layer(h, p["fc_mu"], relu=False)
    d = layer(z, p["dec1"], relu=True)
    d = layer(d, p["dec2"], relu=True)
    d = layer(d, p["dec3"], relu=True)
    x_recon = layer(d, p["dec4"], relu=False)
    t1 = layer(z, p["t1a"], relu=True)
    logits1 = layer(t1, p["t1b"], relu=False)
    t2 = layer(z, p["t2a"], relu=True)
    logits2 = layer(t2, p["t2b"], relu=False)
    return x_recon, logits1, logits2, z


def forward_ref(x, p):
    return _forward_generic(x, p, _layer_ref)


def _layer_emu(x, params, *, relu):
    # Emulates the kernel numerics: folded BN, bf16 weights & activations,
    # f32 accumulation, f32 epilogue.
    w, s = _fold(*params)
    y = jnp.dot(x.astype(jnp.bfloat16), w.astype(jnp.bfloat16),
                preferred_element_type=jnp.float32) + s
    return jnp.maximum(y, 0.0) if relu else y


def forward_emu(x, p):
    return _forward_generic(x, p, _layer_emu)


# ----------------------------------------------------------------------------
if __name__ == "__main__":
    INPUT_DIM = 32
    LATENT_DIM = 16
    NUM_CLASSES = 10

    raw_params = init_params(INPUT_DIM, LATENT_DIM, NUM_CLASSES, seed=42)
    packed = pack_params(raw_params, INPUT_DIM, LATENT_DIM, NUM_CLASSES)

    fwd = jax.jit(functools.partial(
        dual_output_autoencoder_forward,
        input_dim=INPUT_DIM, latent_dim=LATENT_DIM, num_classes=NUM_CLASSES))

    # batch=8 exercises the single-tile path; batch=300 exercises the
    # multi-tile (nb=2) + batch-padding path.
    for batch in (8, 300):
        x = jax.random.normal(jax.random.PRNGKey(0), (batch, INPUT_DIM),
                              jnp.float32)
        outs = jax.block_until_ready(fwd(x, packed))
        x_recon, logits1, logits2, z = outs

        assert x_recon.shape == (batch, INPUT_DIM)
        assert logits1.shape == (batch, NUM_CLASSES)
        assert logits2.shape == (batch, 5)
        assert z.shape == (batch, LATENT_DIM)

        # Tight check against a bf16-weight emulation of the kernel numerics.
        for got, ref in zip(outs, forward_emu(x, raw_params)):
            assert jnp.allclose(got, ref, rtol=2e-3, atol=2e-3), \
                "mismatch vs bf16 emulation"

        # Loose semantic check against the original f32 eval-mode forward.
        for got, ref in zip(outs, forward_ref(x, raw_params)):
            assert jnp.allclose(got, ref, rtol=6e-2, atol=6e-2), \
                "mismatch vs f32 reference"

    print("KERNEL_OK")
</pallas_src>

<mosaic_0001>
module attributes {stable_mosaic.version = 11 : i64} {
  func.func @_fused_forward_kernel(%arg0: i32, %arg1: memref<8x32xf32, #tpu.memory_space<vmem>>, %arg2: memref<32x512xbf16, #tpu.memory_space<vmem>>, %arg3: memref<1x512xf32, #tpu.memory_space<vmem>>, %arg4: memref<512x256xbf16, #tpu.memory_space<vmem>>, %arg5: memref<1x256xf32, #tpu.memory_space<vmem>>, %arg6: memref<256x128xbf16, #tpu.memory_space<vmem>>, %arg7: memref<1x128xf32, #tpu.memory_space<vmem>>, %arg8: memref<128x128xbf16, #tpu.memory_space<vmem>>, %arg9: memref<1x128xf32, #tpu.memory_space<vmem>>, %arg10: memref<128x256xbf16, #tpu.memory_space<vmem>>, %arg11: memref<1x256xf32, #tpu.memory_space<vmem>>, %arg12: memref<128x256xbf16, #tpu.memory_space<vmem>>, %arg13: memref<1x256xf32, #tpu.memory_space<vmem>>, %arg14: memref<256x512xbf16, #tpu.memory_space<vmem>>, %arg15: memref<1x512xf32, #tpu.memory_space<vmem>>, %arg16: memref<512x128xbf16, #tpu.memory_space<vmem>>, %arg17: memref<1x128xf32, #tpu.memory_space<vmem>>, %arg18: memref<128x128xbf16, #tpu.memory_space<vmem>>, %arg19: memref<1x128xf32, #tpu.memory_space<vmem>>, %arg20: memref<8x128xf32, #tpu.memory_space<vmem>>, %arg21: memref<8x256xf32, #tpu.memory_space<vmem>>) attributes {dimension_semantics = [#tpu.dimension_semantics<parallel>], iteration_bounds = array<i64: 1>, scalar_prefetch = 0 : i64, scratch_operands = 0 : i64, tpu.core_type = #tpu.core_type<tc>, window_params = [{transform_indices = @transform_0, window_bounds = array<i64: 8, 32>}, {pipeline_mode = #tpu.pipeline_mode<synchronous>, transform_indices = @transform_1, window_bounds = array<i64: 32, 512>}, {pipeline_mode = #tpu.pipeline_mode<synchronous>, transform_indices = @transform_2, window_bounds = array<i64: 1, 512>}, {pipeline_mode = #tpu.pipeline_mode<synchronous>, transform_indices = @transform_3, window_bounds = array<i64: 512, 256>}, {pipeline_mode = #tpu.pipeline_mode<synchronous>, transform_indices = @transform_4, window_bounds = array<i64: 1, 256>}, {pipeline_mode = #tpu.pipeline_mode<synchronous>, transform_indices = @transform_5, window_bounds = array<i64: 256, 128>}, {pipeline_mode = #tpu.pipeline_mode<synchronous>, transform_indices = @transform_6, window_bounds = array<i64: 1, 128>}, {pipeline_mode = #tpu.pipeline_mode<synchronous>, transform_indices = @transform_7, window_bounds = array<i64: 128, 128>}, {pipeline_mode = #tpu.pipeline_mode<synchronous>, transform_indices = @transform_8, window_bounds = array<i64: 1, 128>}, {pipeline_mode = #tpu.pipeline_mode<synchronous>, transform_indices = @transform_9, window_bounds = array<i64: 128, 256>}, {pipeline_mode = #tpu.pipeline_mode<synchronous>, transform_indices = @transform_10, window_bounds = array<i64: 1, 256>}, {pipeline_mode = #tpu.pipeline_mode<synchronous>, transform_indices = @transform_11, window_bounds = array<i64: 128, 256>}, {pipeline_mode = #tpu.pipeline_mode<synchronous>, transform_indices = @transform_12, window_bounds = array<i64: 1, 256>}, {pipeline_mode = #tpu.pipeline_mode<synchronous>, transform_indices = @transform_13, window_bounds = array<i64: 256, 512>}, {pipeline_mode = #tpu.pipeline_mode<synchronous>, transform_indices = @transform_14, window_bounds = array<i64: 1, 512>}, {pipeline_mode = #tpu.pipeline_mode<synchronous>, transform_indices = @transform_15, window_bounds = array<i64: 512, 128>}, {pipeline_mode = #tpu.pipeline_mode<synchronous>, transform_indices = @transform_16, window_bounds = array<i64: 1, 128>}, {pipeline_mode = #tpu.pipeline_mode<synchronous>, transform_indices = @transform_17, window_bounds = array<i64: 128, 128>}, {pipeline_mode = #tpu.pipeline_mode<synchronous>, transform_indices = @transform_18, window_bounds = array<i64: 1, 128>}, {transform_indices = @transform_19, window_bounds = array<i64: 8, 128>}, {transform_indices = @transform_20, window_bounds = array<i64: 8, 256>}]} {
    %c0 = arith.constant 0 : index
    %c0_0 = arith.constant 0 : index
    %0 = vector.load %arg1[%c0, %c0_0] : memref<8x32xf32, #tpu.memory_space<vmem>>, vector<8x32xf32>
    %1 = arith.truncf %0 : vector<8x32xf32> to vector<8x32xbf16>
    %c0_1 = arith.constant 0 : index
    %c0_2 = arith.constant 0 : index
    %2 = vector.load %arg2[%c0_1, %c0_2] : memref<32x512xbf16, #tpu.memory_space<vmem>>, vector<32x512xbf16>
    %cst = arith.constant dense<0.000000e+00> : vector<8x512xf32>
    %3 = tpu.matmul %1, %2, %cst {dimension_numbers = #tpu.dot_dimension_numbers<[1], [0], [0], [1], [0, 0, 1, 1], [], []>} : vector<8x32xbf16>, vector<32x512xbf16>, vector<8x512xf32> -> vector<8x512xf32>
    %c0_3 = arith.constant 0 : index
    %c0_4 = arith.constant 0 : index
    %4 = vector.load %arg3[%c0_3, %c0_4] : memref<1x512xf32, #tpu.memory_space<vmem>>, vector<1x512xf32>
    %5 = vector.broadcast %4 : vector<1x512xf32> to vector<8x512xf32>
    %6 = arith.addf %3, %5 : vector<8x512xf32>
    %cst_5 = arith.constant 0.000000e+00 : f32
    %7 = vector.broadcast %cst_5 : f32 to vector<8x512xf32>
    %8 = arith.maximumf %6, %7 : vector<8x512xf32>
    %9 = arith.truncf %8 : vector<8x512xf32> to vector<8x512xbf16>
    %c0_6 = arith.constant 0 : index
    %c0_7 = arith.constant 0 : index
    %10 = vector.load %arg4[%c0_6, %c0_7] : memref<512x256xbf16, #tpu.memory_space<vmem>>, vector<512x256xbf16>
    %cst_8 = arith.constant dense<0.000000e+00> : vector<8x256xf32>
    %11 = tpu.matmul %9, %10, %cst_8 {dimension_numbers = #tpu.dot_dimension_numbers<[1], [0], [0], [1], [0, 0, 1, 1], [], []>} : vector<8x512xbf16>, vector<512x256xbf16>, vector<8x256xf32> -> vector<8x256xf32>
    %c0_9 = arith.constant 0 : index
    %c0_10 = arith.constant 0 : index
    %12 = vector.load %arg5[%c0_9, %c0_10] : memref<1x256xf32, #tpu.memory_space<vmem>>, vector<1x256xf32>
    %13 = vector.broadcast %12 : vector<1x256xf32> to vector<8x256xf32>
    %14 = arith.addf %11, %13 : vector<8x256xf32>
    %cst_11 = arith.constant 0.000000e+00 : f32
    %15 = vector.broadcast %cst_11 : f32 to vector<8x256xf32>
    %16 = arith.maximumf %14, %15 : vector<8x256xf32>
    %17 = arith.truncf %16 : vector<8x256xf32> to vector<8x256xbf16>
    %c0_12 = arith.constant 0 : index
    %c0_13 = arith.constant 0 : index
    %18 = vector.load %arg6[%c0_12, %c0_13] : memref<256x128xbf16, #tpu.memory_space<vmem>>, vector<256x128xbf16>
    %cst_14 = arith.constant dense<0.000000e+00> : vector<8x128xf32>
    %19 = tpu.matmul %17, %18, %cst_14 {dimension_numbers = #tpu.dot_dimension_numbers<[1], [0], [0], [1], [0, 0, 1, 1], [], []>} : vector<8x256xbf16>, vector<256x128xbf16>, vector<8x128xf32> -> vector<8x128xf32>
    %c0_15 = arith.constant 0 : index
    %c0_16 = arith.constant 0 : index
    %20 = vector.load %arg7[%c0_15, %c0_16] : memref<1x128xf32, #tpu.memory_space<vmem>>, vector<1x128xf32>
    %21 = vector.broadcast %20 : vector<1x128xf32> to vector<8x128xf32>
    %22 = arith.addf %19, %21 : vector<8x128xf32>
    %cst_17 = arith.constant 0.000000e+00 : f32
    %23 = vector.broadcast %cst_17 : f32 to vector<8x128xf32>
    %24 = arith.maximumf %22, %23 : vector<8x128xf32>
    %25 = arith.truncf %24 : vector<8x128xf32> to vector<8x128xbf16>
    %c0_18 = arith.constant 0 : index
    %c0_19 = arith.constant 0 : index
    %26 = vector.load %arg8[%c0_18, %c0_19] : memref<128x128xbf16, #tpu.memory_space<vmem>>, vector<128x128xbf16>
    %cst_20 = arith.constant dense<0.000000e+00> : vector<8x128xf32>
    %27 = tpu.matmul %25, %26, %cst_20 {dimension_numbers = #tpu.dot_dimension_numbers<[1], [0], [0], [1], [0, 0, 1, 1], [], []>} : vector<8x128xbf16>, vector<128x128xbf16>, vector<8x128xf32> -> vector<8x128xf32>
    %c0_21 = arith.constant 0 : index
    %c0_22 = arith.constant 0 : index
    %28 = vector.load %arg9[%c0_21, %c0_22] : memref<1x128xf32, #tpu.memory_space<vmem>>, vector<1x128xf32>
    %29 = vector.broadcast %28 : vector<1x128xf32> to vector<8x128xf32>
    %30 = arith.addf %27, %29 : vector<8x128xf32>
    %31 = arith.truncf %30 : vector<8x128xf32> to vector<8x128xbf16>
    %c0_23 = arith.constant 0 : index
    %c0_24 = arith.constant 0 : index
    %32 = vector.load %arg10[%c0_23, %c0_24] : memref<128x256xbf16, #tpu.memory_space<vmem>>, vector<128x256xbf16>
    %cst_25 = arith.constant dense<0.000000e+00> : vector<8x256xf32>
    %33 = tpu.matmul %31, %32, %cst_25 {dimension_numbers = #tpu.dot_dimension_numbers<[1], [0], [0], [1], [0, 0, 1, 1], [], []>} : vector<8x128xbf16>, vector<128x256xbf16>, vector<8x256xf32> -> vector<8x256xf32>
    %c0_26 = arith.constant 0 : index
    %c0_27 = arith.constant 0 : index
    %34 = vector.load %arg11[%c0_26, %c0_27] : memref<1x256xf32, #tpu.memory_space<vmem>>, vector<1x256xf32>
    %35 = vector.broadcast %34 : vector<1x256xf32> to vector<8x256xf32>
    %36 = arith.addf %33, %35 : vector<8x256xf32>
    %cst_28 = arith.constant 0.000000e+00 : f32
    %37 = vector.broadcast %cst_28 : f32 to vector<8x256xf32>
    %38 = arith.maximumf %36, %37 : vector<8x256xf32>
    %39 = vector.extract_strided_slice %38 {offsets = [0, 0], sizes = [8, 128], strides = [1, 1]} : vector<8x256xf32> to vector<8x128xf32>
    %40 = vector.extract_strided_slice %38 {offsets = [0, 128], sizes = [8, 128], strides = [1, 1]} : vector<8x256xf32> to vector<8x128xf32>
    %41 = arith.truncf %39 : vector<8x128xf32> to vector<8x128xbf16>
    %c0_29 = arith.constant 0 : index
    %c0_30 = arith.constant 0 : index
    %42 = vector.load %arg12[%c0_29, %c0_30] : memref<128x256xbf16, #tpu.memory_space<vmem>>, vector<128x256xbf16>
    %cst_31 = arith.constant dense<0.000000e+00> : vector<8x256xf32>
    %43 = tpu.matmul %41, %42, %cst_31 {dimension_numbers = #tpu.dot_dimension_numbers<[1], [0], [0], [1], [0, 0, 1, 1], [], []>} : vector<8x128xbf16>, vector<128x256xbf16>, vector<8x256xf32> -> vector<8x256xf32>
    %c0_32 = arith.constant 0 : index
    %c0_33 = arith.constant 0 : index
    %44 = vector.load %arg13[%c0_32, %c0_33] : memref<1x256xf32, #tpu.memory_space<vmem>>, vector<1x256xf32>
    %45 = vector.broadcast %44 : vector<1x256xf32> to vector<8x256xf32>
    %46 = arith.addf %43, %45 : vector<8x256xf32>
    %cst_34 = arith.constant 0.000000e+00 : f32
    %47 = vector.broadcast %cst_34 : f32 to vector<8x256xf32>
    %48 = arith.maximumf %46, %47 : vector<8x256xf32>
    %49 = arith.truncf %48 : vector<8x256xf32> to vector<8x256xbf16>
    %c0_35 = arith.constant 0 : index
    %c0_36 = arith.constant 0 : index
    %50 = vector.load %arg14[%c0_35, %c0_36] : memref<256x512xbf16, #tpu.memory_space<vmem>>, vector<256x512xbf16>
    %cst_37 = arith.constant dense<0.000000e+00> : vector<8x512xf32>
    %51 = tpu.matmul %49, %50, %cst_37 {dimension_numbers = #tpu.dot_dimension_numbers<[1], [0], [0], [1], [0, 0, 1, 1], [], []>} : vector<8x256xbf16>, vector<256x512xbf16>, vector<8x512xf32> -> vector<8x512xf32>
    %c0_38 = arith.constant 0 : index
    %c0_39 = arith.constant 0 : index
    %52 = vector.load %arg15[%c0_38, %c0_39] : memref<1x512xf32, #tpu.memory_space<vmem>>, vector<1x512xf32>
    %53 = vector.broadcast %52 : vector<1x512xf32> to vector<8x512xf32>
    %54 = arith.addf %51, %53 : vector<8x512xf32>
    %cst_40 = arith.constant 0.000000e+00 : f32
    %55 = vector.broadcast %cst_40 : f32 to vector<8x512xf32>
    %56 = arith.maximumf %54, %55 : vector<8x512xf32>
    %57 = arith.truncf %56 : vector<8x512xf32> to vector<8x512xbf16>
    %c0_41 = arith.constant 0 : index
    %c0_42 = arith.constant 0 : index
    %58 = vector.load %arg16[%c0_41, %c0_42] : memref<512x128xbf16, #tpu.memory_space<vmem>>, vector<512x128xbf16>
    %cst_43 = arith.constant dense<0.000000e+00> : vector<8x128xf32>
    %59 = tpu.matmul %57, %58, %cst_43 {dimension_numbers = #tpu.dot_dimension_numbers<[1], [0], [0], [1], [0, 0, 1, 1], [], []>} : vector<8x512xbf16>, vector<512x128xbf16>, vector<8x128xf32> -> vector<8x128xf32>
    %c0_44 = arith.constant 0 : index
    %c0_45 = arith.constant 0 : index
    %60 = vector.load %arg17[%c0_44, %c0_45] : memref<1x128xf32, #tpu.memory_space<vmem>>, vector<1x128xf32>
    %61 = vector.broadcast %60 : vector<1x128xf32> to vector<8x128xf32>
    %62 = arith.addf %59, %61 : vector<8x128xf32>
    %63 = arith.truncf %40 : vector<8x128xf32> to vector<8x128xbf16>
    %c0_46 = arith.constant 0 : index
    %c0_47 = arith.constant 0 : index
    %64 = vector.load %arg18[%c0_46, %c0_47] : memref<128x128xbf16, #tpu.memory_space<vmem>>, vector<128x128xbf16>
    %cst_48 = arith.constant dense<0.000000e+00> : vector<8x128xf32>
    %65 = tpu.matmul %63, %64, %cst_48 {dimension_numbers = #tpu.dot_dimension_numbers<[1], [0], [0], [1], [0, 0, 1, 1], [], []>} : vector<8x128xbf16>, vector<128x128xbf16>, vector<8x128xf32> -> vector<8x128xf32>
    %c0_49 = arith.constant 0 : index
    %c0_50 = arith.constant 0 : index
    %66 = vector.load %arg19[%c0_49, %c0_50] : memref<1x128xf32, #tpu.memory_space<vmem>>, vector<1x128xf32>
    %67 = vector.broadcast %66 : vector<1x128xf32> to vector<8x128xf32>
    %68 = arith.addf %65, %67 : vector<8x128xf32>
    %c0_51 = arith.constant 0 : index
    %c0_52 = arith.constant 0 : index
    %69 = vector.load %arg20[%c0_51, %c0_52] : memref<8x128xf32, #tpu.memory_space<vmem>>, vector<8x128xf32>
    tpu.vector_store %arg20[%c0_51, %c0_52], %62 {strides = array<i32>} : memref<8x128xf32, #tpu.memory_space<vmem>>, vector<8x128xf32>,
    %c0_53 = arith.constant 0 : index
    %c0_54 = arith.constant 0 : index
    %70 = vector.load %arg21[%c0_53, %c0_54] : memref<8x256xf32, #tpu.memory_space<vmem>>, vector<8x128xf32>
    tpu.vector_store %arg21[%c0_53, %c0_54], %30 {strides = array<i32>} : memref<8x256xf32, #tpu.memory_space<vmem>>, vector<8x128xf32>,
    %c0_55 = arith.constant 0 : index
    %c128 = arith.constant 128 : index
    %71 = vector.load %arg21[%c0_55, %c128] : memref<8x256xf32, #tpu.memory_space<vmem>>, vector<8x128xf32>
    tpu.vector_store %arg21[%c0_55, %c128], %68 {strides = array<i32>} : memref<8x256xf32, #tpu.memory_space<vmem>>, vector<8x128xf32>,
    return
  }
  func.func @transform_0(%arg0: i32) -> (i32, i32) {
    %c0_i32 = arith.constant 0 : i32
    %c0_i32_0 = arith.constant 0 : i32
    return %arg0, %c0_i32 : i32, i32
  }
  func.func @transform_1(%arg0: i32) -> (i32, i32) {
    %c0_i32 = arith.constant 0 : i32
    %c0_i32_0 = arith.constant 0 : i32
    %c0_i32_1 = arith.constant 0 : i32
    return %c0_i32, %c0_i32_0 : i32, i32
  }
  func.func @transform_2(%arg0: i32) -> (i32, i32) {
    %c0_i32 = arith.constant 0 : i32
    %c0_i32_0 = arith.constant 0 : i32
    %c0_i32_1 = arith.constant 0 : i32
    return %c0_i32, %c0_i32_0 : i32, i32
  }
  func.func @transform_3(%arg0: i32) -> (i32, i32) {
    %c0_i32 = arith.constant 0 : i32
    %c0_i32_0 = arith.constant 0 : i32
    %c0_i32_1 = arith.constant 0 : i32
    return %c0_i32, %c0_i32_0 : i32, i32
  }
  func.func @transform_4(%arg0: i32) -> (i32, i32) {
    %c0_i32 = arith.constant 0 : i32
    %c0_i32_0 = arith.constant 0 : i32
    %c0_i32_1 = arith.constant 0 : i32
    return %c0_i32, %c0_i32_0 : i32, i32
  }
  func.func @transform_5(%arg0: i32) -> (i32, i32) {
    %c0_i32 = arith.constant 0 : i32
    %c0_i32_0 = arith.constant 0 : i32
    %c0_i32_1 = arith.constant 0 : i32
    return %c0_i32, %c0_i32_0 : i32, i32
  }
  func.func @transform_6(%arg0: i32) -> (i32, i32) {
    %c0_i32 = arith.constant 0 : i32
    %c0_i32_0 = arith.constant 0 : i32
    %c0_i32_1 = arith.constant 0 : i32
    return %c0_i32, %c0_i32_0 : i32, i32
  }
  func.func @transform_7(%arg0: i32) -> (i32, i32) {
    %c0_i32 = arith.constant 0 : i32
    %c0_i32_0 = arith.constant 0 : i32
    %c0_i32_1 = arith.constant 0 : i32
    return %c0_i32, %c0_i32_0 : i32, i32
  }
  func.func @transform_8(%arg0: i32) -> (i32, i32) {
    %c0_i32 = arith.constant 0 : i32
    %c0_i32_0 = arith.constant 0 : i32
    %c0_i32_1 = arith.constant 0 : i32
    return %c0_i32, %c0_i32_0 : i32, i32
  }
  func.func @transform_9(%arg0: i32) -> (i32, i32) {
    %c0_i32 = arith.constant 0 : i32
    %c0_i32_0 = arith.constant 0 : i32
    %c0_i32_1 = arith.constant 0 : i32
    return %c0_i32, %c0_i32_0 : i32, i32
  }
  func.func @transform_10(%arg0: i32) -> (i32, i32) {
    %c0_i32 = arith.constant 0 : i32
    %c0_i32_0 = arith.constant 0 : i32
    %c0_i32_1 = arith.constant 0 : i32
    return %c0_i32, %c0_i32_0 : i32, i32
  }
  func.func @transform_11(%arg0: i32) -> (i32, i32) {
    %c0_i32 = arith.constant 0 : i32
    %c0_i32_0 = arith.constant 0 : i32
    %c0_i32_1 = arith.constant 0 : i32
    return %c0_i32, %c0_i32_0 : i32, i32
  }
  func.func @transform_12(%arg0: i32) -> (i32, i32) {
    %c0_i32 = arith.constant 0 : i32
    %c0_i32_0 = arith.constant 0 : i32
    %c0_i32_1 = arith.constant 0 : i32
    return %c0_i32, %c0_i32_0 : i32, i32
  }
  func.func @transform_13(%arg0: i32) -> (i32, i32) {
    %c0_i32 = arith.constant 0 : i32
    %c0_i32_0 = arith.constant 0 : i32
    %c0_i32_1 = arith.constant 0 : i32
    return %c0_i32, %c0_i32_0 : i32, i32
  }
  func.func @transform_14(%arg0: i32) -> (i32, i32) {
    %c0_i32 = arith.constant 0 : i32
    %c0_i32_0 = arith.constant 0 : i32
    %c0_i32_1 = arith.constant 0 : i32
    return %c0_i32, %c0_i32_0 : i32, i32
  }
  func.func @transform_15(%arg0: i32) -> (i32, i32) {
    %c0_i32 = arith.constant 0 : i32
    %c0_i32_0 = arith.constant 0 : i32
    %c0_i32_1 = arith.constant 0 : i32
    return %c0_i32, %c0_i32_0 : i32, i32
  }
  func.func @transform_16(%arg0: i32) -> (i32, i32) {
    %c0_i32 = arith.constant 0 : i32
    %c0_i32_0 = arith.constant 0 : i32
    %c0_i32_1 = arith.constant 0 : i32
    return %c0_i32, %c0_i32_0 : i32, i32
  }
  func.func @transform_17(%arg0: i32) -> (i32, i32) {
    %c0_i32 = arith.constant 0 : i32
    %c0_i32_0 = arith.constant 0 : i32
    %c0_i32_1 = arith.constant 0 : i32
    return %c0_i32, %c0_i32_0 : i32, i32
  }
  func.func @transform_18(%arg0: i32) -> (i32, i32) {
    %c0_i32 = arith.constant 0 : i32
    %c0_i32_0 = arith.constant 0 : i32
    %c0_i32_1 = arith.constant 0 : i32
    return %c0_i32, %c0_i32_0 : i32, i32
  }
  func.func @transform_19(%arg0: i32) -> (i32, i32) {
    %c0_i32 = arith.constant 0 : i32
    %c0_i32_0 = arith.constant 0 : i32
    return %arg0, %c0_i32 : i32, i32
  }
  func.func @transform_20(%arg0: i32) -> (i32, i32) {
    %c0_i32 = arith.constant 0 : i32
    %c0_i32_0 = arith.constant 0 : i32
    return %arg0, %c0_i32 : i32, i32
  }
}

</mosaic_0001>

<llo_original>
// kernel: dual_output_autoencoder_forward.1
$region0: #{dual_output_autoencoder_forward.1}
  #allocation0 [shape = 'u32[]', space=smem, size = 0x4, offset = 0x4, fixed_abs, tag = 'smem constant byte address 0x4 - core index']
  #allocation1 [shape = 'u32[72,128]{1,0:T(1,128)}', space=vmem, size = 0x9000, scoped, tag = 'internal scratch']
  %s0 = inlined_call_operand.hbm [shape: f32[8,32], index: 0, kind: input, shape index: {}]
  %s1 = inlined_call_operand.hbm [shape: bf16[32,512], index: 1, kind: input, shape index: {}]
  %s2 = inlined_call_operand.hbm [shape: f32[1,512], index: 2, kind: input, shape index: {}]
  %s3 = inlined_call_operand.hbm [shape: bf16[512,256], index: 3, kind: input, shape index: {}]
  %s4 = inlined_call_operand.vmem [shape: f32[1,256], index: 4, kind: input, shape index: {}]
  %s5 = inlined_call_operand.hbm [shape: bf16[256,128], index: 5, kind: input, shape index: {}]
  %s6 = inlined_call_operand.hbm [shape: f32[1,128], index: 6, kind: input, shape index: {}]
  %s7 = inlined_call_operand.hbm [shape: bf16[128,128], index: 7, kind: input, shape index: {}]
  %s8 = inlined_call_operand.hbm [shape: f32[1,128], index: 8, kind: input, shape index: {}]
  %s9 = inlined_call_operand.hbm [shape: bf16[128,256], index: 9, kind: input, shape index: {}]
  %s10 = inlined_call_operand.vmem [shape: f32[1,256], index: 10, kind: input, shape index: {}]
  %s11 = inlined_call_operand.hbm [shape: bf16[128,256], index: 11, kind: input, shape index: {}]
  %s12 = inlined_call_operand.vmem [shape: f32[1,256], index: 12, kind: input, shape index: {}]
  %s13 = inlined_call_operand.hbm [shape: bf16[256,512], index: 13, kind: input, shape index: {}]
  %s14 = inlined_call_operand.vmem [shape: f32[1,512], index: 14, kind: input, shape index: {}]
  %s15 = inlined_call_operand.hbm [shape: bf16[512,128], index: 15, kind: input, shape index: {}]
  %s16 = inlined_call_operand.vmem [shape: f32[1,128], index: 16, kind: input, shape index: {}]
  %s17 = inlined_call_operand.hbm [shape: bf16[128,128], index: 17, kind: input, shape index: {}]
  %s18 = inlined_call_operand.vmem [shape: f32[1,128], index: 18, kind: input, shape index: {}]
  %s19 = inlined_call_operand.hbm [shape: f32[8,128], index: 19, kind: output, shape index: {0}]
  %s20 = inlined_call_operand.vmem [shape: f32[8,256], index: 20, kind: output, shape index: {1}]
  %21 = xla_tuple %s19, %s20
  %s22 = sld [smem:[#allocation0]]
  $region146: #{dual_output_autoencoder_forward.1} parent=0
    _
  %s24 = ssub.s32 1, %s22
  %s25 = scalar_select 0, %s24, %s22
  $region1: #{dual_output_autoencoder_forward.1} parent=0
    #allocation2 [shape = 'u8[4096]{0}', space=vmem, size = 0x1000, scoped, tag = 'input window, operand 0, single buffered']
    #allocation3 [shape = 's32[1]{0}', space=sflag, size = 0x4, scoped, tag = 'scoped memory for dual_output_autoencoder_forward.1']
    #allocation4 [shape = 's32[1]{0}', space=sflag, size = 0x4, scoped, tag = 'scoped memory for dual_output_autoencoder_forward.1']
    #allocation5 [shape = 'u8[32768]{0}', space=vmem, size = 0x8000, scoped, tag = 'input window, operand 1, single buffered']
    #allocation6 [shape = 's32[1]{0}', space=sflag, size = 0x4, scoped, tag = 'scoped memory for dual_output_autoencoder_forward.1']
    #allocation7 [shape = 'u8[2048]{0}', space=vmem, size = 0x800, scoped, tag = 'input window, operand 2, single buffered']
    #allocation8 [shape = 'u8[262144]{0}', space=vmem, size = 0x40000, scoped, tag = 'input window, operand 3, single buffered']
    #allocation9 [shape = 's32[1]{0}', space=sflag, size = 0x4, scoped, tag = 'scoped memory for dual_output_autoencoder_forward.1']
    #allocation10 [shape = 'u8[65536]{0}', space=vmem, size = 0x10000, scoped, tag = 'input window, operand 5, single buffered']
    #allocation11 [shape = 'u8[512]{0}', space=vmem, size = 0x400, scoped, tag = 'input window, operand 6, single buffered']
    #allocation12 [shape = 's32[1]{0}', space=sflag, size = 0x4, scoped, tag = 'scoped memory for dual_output_autoencoder_forward.1']
    #allocation13 [shape = 'u8[32768]{0}', space=vmem, size = 0x8000, scoped, tag = 'input window, operand 7, single buffered']
    #allocation14 [shape = 'u8[512]{0}', space=vmem, size = 0x400, scoped, tag = 'input window, operand 8, single buffered']
    #allocation15 [shape = 's32[1]{0}', space=sflag, size = 0x4, scoped, tag = 'scoped memory for dual_output_autoencoder_forward.1']
    #allocation16 [shape = 'u8[65536]{0}', space=vmem, size = 0x10000, scoped, tag = 'input window, operand 9, single buffered']
    #allocation17 [shape = 'u8[65536]{0}', space=vmem, size = 0x10000, scoped, tag = 'input window, operand 11, single buffered']
    #allocation18 [shape = 's32[1]{0}', space=sflag, size = 0x4, scoped, tag = 'scoped memory for dual_output_autoencoder_forward.1']
    #allocation19 [shape = 'u8[262144]{0}', space=vmem, size = 0x40000, scoped, tag = 'input window, operand 13, single buffered']
    #allocation20 [shape = 'u8[131072]{0}', space=vmem, size = 0x20000, scoped, tag = 'input window, operand 15, single buffered']
    #allocation21 [shape = 's32[1]{0}', space=sflag, size = 0x4, scoped, tag = 'scoped memory for dual_output_autoencoder_forward.1']
    #allocation22 [shape = 'u8[32768]{0}', space=vmem, size = 0x8000, scoped, tag = 'input window, operand 17, single buffered']
    #allocation23 [shape = 'u8[4096]{0}', space=vmem, size = 0x1000, scoped, tag = 'output window, operand 0, single buffered']
    %26 = vsyncpa [#allocation3], 0
    %27 = vsyncpa [#allocation6], 0
    %28 = vsyncpa [#allocation9], 0
    %29 = vsyncpa [#allocation12], 0
    %30 = vsyncpa [#allocation15], 0
    %31 = vsyncpa [#allocation18], 0
    %32 = vsyncpa [#allocation21], 0
    %33 = vsyncpa [#allocation4], 0
    // Predicated region
    $region2: #{dual_output_autoencoder_forward.1} parent=1 // pred_check
      _
    $region3: #{dual_output_autoencoder_forward.1} parent=1 // pred_check_branch
      %35 = sbr.rel (0) target = $region5
    $region4: #{dual_output_autoencoder_forward.1} parent=1 // pred_region
      %37 = vsyncadd [#allocation3], 0
      %s39 = sshll.u32 %s0, 4
      %s40 = int_to_ptr.hbm [resolvable:$true] %s39
      %s41 = sshll.u32 [#allocation2], 4
      %s42 = int_to_ptr.vmem [resolvable:$true] %s41
      %44 = dma.hbm_to_vmem [thread:$0]  %s40, 128, %s42, [#allocation3]
    $region5: #{dual_output_autoencoder_forward.1} parent=1 // pred_fallthru
      _
    // Predicated region
    $region6: #{dual_output_autoencoder_forward.1} parent=1 // pred_check
      _
    $region7: #{dual_output_autoencoder_forward.1} parent=1 // pred_check_branch
      %46 = sbr.rel (0) target = $region9
    $region8: #{dual_output_autoencoder_forward.1} parent=1 // pred_region
      %48 = vsyncadd [#allocation6], 0
      %s49 = sshll.u32 %s1, 4
      %s50 = int_to_ptr.hbm [resolvable:$true] %s49
      %s51 = sshll.u32 [#allocation5], 4
      %s52 = int_to_ptr.vmem [resolvable:$true] %s51
      %57 = dma.hbm_to_vmem [thread:$0]  %s50, 1024, %s52, [#allocation6], 256, 256, 16
    $region9: #{dual_output_autoencoder_forward.1} parent=1 // pred_fallthru
      _
    // Predicated region
    $region10: #{dual_output_autoencoder_forward.1} parent=1 // pred_check
      _
    $region11: #{dual_output_autoencoder_forward.1} parent=1 // pred_check_branch
      %59 = sbr.rel (0) target = $region13
    $region12: #{dual_output_autoencoder_forward.1} parent=1 // pred_region
      %61 = vsyncadd [#allocation6], 0
      %s63 = sshll.u32 %s2, 4
      %s64 = int_to_ptr.hbm [resolvable:$true] %s63
      %s65 = sshll.u32 [#allocation7], 4
      %s66 = int_to_ptr.vmem [resolvable:$true] %s65
      %68 = dma.hbm_to_vmem [thread:$0]  %s64, 64, %s66, [#allocation6]
    $region13: #{dual_output_autoencoder_forward.1} parent=1 // pred_fallthru
      _
    // Predicated region
    $region14: #{dual_output_autoencoder_forward.1} parent=1 // pred_check
      _
    $region15: #{dual_output_autoencoder_forward.1} parent=1 // pred_check_branch
      %70 = sbr.rel (0) target = $region17
    $region16: #{dual_output_autoencoder_forward.1} parent=1 // pred_region
      %72 = vsyncadd [#allocation9], 0
      %s73 = sshll.u32 %s3, 4
      %s74 = int_to_ptr.hbm [resolvable:$true] %s73
      %s75 = sshll.u32 [#allocation8], 4
      %s76 = int_to_ptr.vmem [resolvable:$true] %s75
      %81 = dma.hbm_to_vmem [thread:$0]  %s74, 8192, %s76, [#allocation9], 128, 128, 8
    $region17: #{dual_output_autoencoder_forward.1} parent=1 // pred_fallthru
      _
    // Predicated region
    $region18: #{dual_output_autoencoder_forward.1} parent=1 // pred_check
      _
    $region19: #{dual_output_autoencoder_forward.1} parent=1 // pred_check_branch
      %83 = sbr.rel (0) target = $region21
    $region20: #{dual_output_autoencoder_forward.1} parent=1 // pred_region
      _
    $region21: #{dual_output_autoencoder_forward.1} parent=1 // pred_fallthru
      _
    // Predicated region
    $region22: #{dual_output_autoencoder_forward.1} parent=1 // pred_check
      _
    $region23: #{dual_output_autoencoder_forward.1} parent=1 // pred_check_branch
      %85 = sbr.rel (0) target = $region25
    $region24: #{dual_output_autoencoder_forward.1} parent=1 // pred_region
      %87 = vsyncadd [#allocation9], 0
      %s88 = sshll.u32 %s5, 4
      %s89 = int_to_ptr.hbm [resolvable:$true] %s88
      %s90 = sshll.u32 [#allocation10], 4
      %s91 = int_to_ptr.vmem [resolvable:$true] %s90
      %96 = dma.hbm_to_vmem [thread:$0]  %s89, 2048, %s91, [#allocation9], 64, 64, 4
    $region25: #{dual_output_autoencoder_forward.1} parent=1 // pred_fallthru
      _
    // Predicated region
    $region26: #{dual_output_autoencoder_forward.1} parent=1 // pred_check
      _
    $region27: #{dual_output_autoencoder_forward.1} parent=1 // pred_check_branch
      %98 = sbr.rel (0) target = $region29
    $region28: #{dual_output_autoencoder_forward.1} parent=1 // pred_region
      %100 = vsyncadd [#allocation12], 0
      %s102 = sshll.u32 %s6, 4
      %s103 = int_to_ptr.hbm [resolvable:$true] %s102
      %s104 = sshll.u32 [#allocation11], 4
      %s105 = int_to_ptr.vmem [resolvable:$true] %s104
      %107 = dma.hbm_to_vmem [thread:$0]  %s103, 16, %s105, [#allocation12]
    $region29: #{dual_output_autoencoder_forward.1} parent=1 // pred_fallthru
      _
    // Predicated region
    $region30: #{dual_output_autoencoder_forward.1} parent=1 // pred_check
      _
    $region31: #{dual_output_autoencoder_forward.1} parent=1 // pred_check_branch
      %109 = sbr.rel (0) target = $region33
    $region32: #{dual_output_autoencoder_forward.1} parent=1 // pred_region
      %111 = vsyncadd [#allocation12], 0
      %s112 = sshll.u32 %s7, 4
      %s113 = int_to_ptr.hbm [resolvable:$true] %s112
      %s114 = sshll.u32 [#allocation13], 4
      %s115 = int_to_ptr.vmem [resolvable:$true] %s114
      %120 = dma.hbm_to_vmem [thread:$0]  %s113, 1024, %s115, [#allocation12], 64, 64, 4
    $region33: #{dual_output_autoencoder_forward.1} parent=1 // pred_fallthru
      _
    // Predicated region
    $region34: #{dual_output_autoencoder_forward.1} parent=1 // pred_check
      _
    $region35: #{dual_output_autoencoder_forward.1} parent=1 // pred_check_branch
      %122 = sbr.rel (0) target = $region37
    $region36: #{dual_output_autoencoder_forward.1} parent=1 // pred_region
      %124 = vsyncadd [#allocation15], 0
      %s126 = sshll.u32 %s8, 4
      %s127 = int_to_ptr.hbm [resolvable:$true] %s126
      %s128 = sshll.u32 [#allocation14], 4
      %s129 = int_to_ptr.vmem [resolvable:$true] %s128
      %131 = dma.hbm_to_vmem [thread:$0]  %s127, 16, %s129, [#allocation15]
    $region37: #{dual_output_autoencoder_forward.1} parent=1 // pred_fallthru
      _
    // Predicated region
    $region38: #{dual_output_autoencoder_forward.1} parent=1 // pred_check
      _
    $region39: #{dual_output_autoencoder_forward.1} parent=1 // pred_check_branch
      %133 = sbr.rel (0) target = $region41
    $region40: #{dual_output_autoencoder_forward.1} parent=1 // pred_region
      %135 = vsyncadd [#allocation15], 0
      %s136 = sshll.u32 %s9, 4
      %s137 = int_to_ptr.hbm [resolvable:$true] %s136
      %s138 = sshll.u32 [#allocation16], 4
      %s139 = int_to_ptr.vmem [resolvable:$true] %s138
      %144 = dma.hbm_to_vmem [thread:$0]  %s137, 2048, %s139, [#allocation15], 128, 128, 8
    $region41: #{dual_output_autoencoder_forward.1} parent=1 // pred_fallthru
      _
    // Predicated region
    $region42: #{dual_output_autoencoder_forward.1} parent=1 // pred_check
      _
    $region43: #{dual_output_autoencoder_forward.1} parent=1 // pred_check_branch
      %146 = sbr.rel (0) target = $region45
    $region44: #{dual_output_autoencoder_forward.1} parent=1 // pred_region
      _
    $region45: #{dual_output_autoencoder_forward.1} parent=1 // pred_fallthru
      _
    // Predicated region
    $region46: #{dual_output_autoencoder_forward.1} parent=1 // pred_check
      _
    $region47: #{dual_output_autoencoder_forward.1} parent=1 // pred_check_branch
      %148 = sbr.rel (0) target = $region49
    $region48: #{dual_output_autoencoder_forward.1} parent=1 // pred_region
      %150 = vsyncadd [#allocation18], 0
      %s151 = sshll.u32 %s11, 4
      %s152 = int_to_ptr.hbm [resolvable:$true] %s151
      %s153 = sshll.u32 [#allocation17], 4
      %s154 = int_to_ptr.vmem [resolvable:$true] %s153
      %159 = dma.hbm_to_vmem [thread:$0]  %s152, 2048, %s154, [#allocation18], 128, 128, 8
    $region49: #{dual_output_autoencoder_forward.1} parent=1 // pred_fallthru
      _
    // Predicated region
    $region50: #{dual_output_autoencoder_forward.1} parent=1 // pred_check
      _
    $region51: #{dual_output_autoencoder_forward.1} parent=1 // pred_check_branch
      %161 = sbr.rel (0) target = $region53
    $region52: #{dual_output_autoencoder_forward.1} parent=1 // pred_region
      _
    $region53: #{dual_output_autoencoder_forward.1} parent=1 // pred_fallthru
      _
    // Predicated region
    $region54: #{dual_output_autoencoder_forward.1} parent=1 // pred_check
      _
    $region55: #{dual_output_autoencoder_forward.1} parent=1 // pred_check_branch
      %163 = sbr.rel (0) target = $region57
    $region56: #{dual_output_autoencoder_forward.1} parent=1 // pred_region
      %165 = vsyncadd [#allocation18], 0
      %s166 = sshll.u32 %s13, 4
      %s167 = int_to_ptr.hbm [resolvable:$true] %s166
      %s168 = sshll.u32 [#allocation19], 4
      %s169 = int_to_ptr.vmem [resolvable:$true] %s168
      %174 = dma.hbm_to_vmem [thread:$0]  %s167, 8192, %s169, [#allocation18], 256, 256, 16
    $region57: #{dual_output_autoencoder_forward.1} parent=1 // pred_fallthru
      _
    // Predicated region
    $region58: #{dual_output_autoencoder_forward.1} parent=1 // pred_check
      _
    $region59: #{dual_output_autoencoder_forward.1} parent=1 // pred_check_branch
      %176 = sbr.rel (0) target = $region61
    $region60: #{dual_output_autoencoder_forward.1} parent=1 // pred_region
      _
    $region61: #{dual_output_autoencoder_forward.1} parent=1 // pred_fallthru
      _
    // Predicated region
    $region62: #{dual_output_autoencoder_forward.1} parent=1 // pred_check
      _
    $region63: #{dual_output_autoencoder_forward.1} parent=1 // pred_check_branch
      %178 = sbr.rel (0) target = $region65
    $region64: #{dual_output_autoencoder_forward.1} parent=1 // pred_region
      %180 = vsyncadd [#allocation21], 0
      %s181 = sshll.u32 %s15, 4
      %s182 = int_to_ptr.hbm [resolvable:$true] %s181
      %s183 = sshll.u32 [#allocation20], 4
      %s184 = int_to_ptr.vmem [resolvable:$true] %s183
      %189 = dma.hbm_to_vmem [thread:$0]  %s182, 4096, %s184, [#allocation21], 64, 64, 4
    $region65: #{dual_output_autoencoder_forward.1} parent=1 // pred_fallthru
      _
    // Predicated region
    $region66: #{dual_output_autoencoder_forward.1} parent=1 // pred_check
      _
    $region67: #{dual_output_autoencoder_forward.1} parent=1 // pred_check_branch
      %191 = sbr.rel (0) target = $region69
    $region68: #{dual_output_autoencoder_forward.1} parent=1 // pred_region
      _
    $region69: #{dual_output_autoencoder_forward.1} parent=1 // pred_fallthru
      _
    // Predicated region
    $region70: #{dual_output_autoencoder_forward.1} parent=1 // pred_check
      _
    $region71: #{dual_output_autoencoder_forward.1} parent=1 // pred_check_branch
      %193 = sbr.rel (0) target = $region73
    $region72: #{dual_output_autoencoder_forward.1} parent=1 // pred_region
      %195 = vsyncadd [#allocation21], 0
      %s196 = sshll.u32 %s17, 4
      %s197 = int_to_ptr.hbm [resolvable:$true] %s196
      %s198 = sshll.u32 [#allocation22], 4
      %s199 = int_to_ptr.vmem [resolvable:$true] %s198
      %204 = dma.hbm_to_vmem [thread:$0]  %s197, 1024, %s199, [#allocation21], 64, 64, 4
    $region73: #{dual_output_autoencoder_forward.1} parent=1 // pred_fallthru
      _
    // Predicated region
    $region74: #{dual_output_autoencoder_forward.1} parent=1 // pred_check
      _
    $region75: #{dual_output_autoencoder_forward.1} parent=1 // pred_check_branch
      %206 = sbr.rel (0) target = $region77
    $region76: #{dual_output_autoencoder_forward.1} parent=1 // pred_region
      _
    $region77: #{dual_output_autoencoder_forward.1} parent=1 // pred_fallthru
      _
    // Predicated region
    $region78: #{dual_output_autoencoder_forward.1} parent=1 // pred_check
      _
    $region79: #{dual_output_autoencoder_forward.1} parent=1 // pred_check_branch
      %208 = sbr.rel (0) target = $region81
    $region80: #{dual_output_autoencoder_forward.1} parent=1 // pred_region
      %210 = dma.done [#allocation3], 128
    $region81: #{dual_output_autoencoder_forward.1} parent=1 // pred_fallthru
      _
    // Predicated region
    $region82: #{dual_output_autoencoder_forward.1} parent=1 // pred_check
      _
    $region83: #{dual_output_autoencoder_forward.1} parent=1 // pred_check_branch
      %212 = sbr.rel (0) target = $region85
    $region84: #{dual_output_autoencoder_forward.1} parent=1 // pred_region
      %214 = dma.done [#allocation6], 1024
    $region85: #{dual_output_autoencoder_forward.1} parent=1 // pred_fallthru
      _
    // Predicated region
    $region86: #{dual_output_autoencoder_forward.1} parent=1 // pred_check
      _
    $region87: #{dual_output_autoencoder_forward.1} parent=1 // pred_check_branch
      %216 = sbr.rel (0) target = $region89
    $region88: #{dual_output_autoencoder_forward.1} parent=1 // pred_region
      %218 = dma.done [#allocation6], 64
    $region89: #{dual_output_autoencoder_forward.1} parent=1 // pred_fallthru
      _
    // Predicated region
    $region90: #{dual_output_autoencoder_forward.1} parent=1 // pred_check
      _
    $region91: #{dual_output_autoencoder_forward.1} parent=1 // pred_check_branch
      %220 = sbr.rel (0) target = $region93
    $region92: #{dual_output_autoencoder_forward.1} parent=1 // pred_region
      %222 = dma.done [#allocation9], 8192
    $region93: #{dual_output_autoencoder_forward.1} parent=1 // pred_fallthru
      _
    // Predicated region
    $region94: #{dual_output_autoencoder_forward.1} parent=1 // pred_check
      _
    $region95: #{dual_output_autoencoder_forward.1} parent=1 // pred_check_branch
      %224 = sbr.rel (0) target = $region97
    $region96: #{dual_output_autoencoder_forward.1} parent=1 // pred_region
      %226 = dma.done [#allocation9], 2048
    $region97: #{dual_output_autoencoder_forward.1} parent=1 // pred_fallthru
      _
    // Predicated region
    $region98: #{dual_output_autoencoder_forward.1} parent=1 // pred_check
      _
    $region99: #{dual_output_autoencoder_forward.1} parent=1 // pred_check_branch
      %228 = sbr.rel (0) target = $region101
    $region100: #{dual_output_autoencoder_forward.1} parent=1 // pred_region
      %230 = dma.done [#allocation12], 16
    $region101: #{dual_output_autoencoder_forward.1} parent=1 // pred_fallthru
      _
    // Predicated region
    $region102: #{dual_output_autoencoder_forward.1} parent=1 // pred_check
      _
    $region103: #{dual_output_autoencoder_forward.1} parent=1 // pred_check_branch
      %232 = sbr.rel (0) target = $region105
    $region104: #{dual_output_autoencoder_forward.1} parent=1 // pred_region
      %234 = dma.done [#allocation12], 1024
    $region105: #{dual_output_autoencoder_forward.1} parent=1 // pred_fallthru
      _
    // Predicated region
    $region106: #{dual_output_autoencoder_forward.1} parent=1 // pred_check
      _
    $region107: #{dual_output_autoencoder_forward.1} parent=1 // pred_check_branch
      %236 = sbr.rel (0) target = $region109
    $region108: #{dual_output_autoencoder_forward.1} parent=1 // pred_region
      %238 = dma.done [#allocation15], 16
    $region109: #{dual_output_autoencoder_forward.1} parent=1 // pred_fallthru
      _
    // Predicated region
    $region110: #{dual_output_autoencoder_forward.1} parent=1 // pred_check
      _
    $region111: #{dual_output_autoencoder_forward.1} parent=1 // pred_check_branch
      %240 = sbr.rel (0) target = $region113
    $region112: #{dual_output_autoencoder_forward.1} parent=1 // pred_region
      %242 = dma.done [#allocation15], 2048
    $region113: #{dual_output_autoencoder_forward.1} parent=1 // pred_fallthru
      _
    // Predicated region
    $region114: #{dual_output_autoencoder_forward.1} parent=1 // pred_check
      _
    $region115: #{dual_output_autoencoder_forward.1} parent=1 // pred_check_branch
      %244 = sbr.rel (0) target = $region117
    $region116: #{dual_output_autoencoder_forward.1} parent=1 // pred_region
      %246 = dma.done [#allocation18], 2048
    $region117: #{dual_output_autoencoder_forward.1} parent=1 // pred_fallthru
      _
    // Predicated region
    $region118: #{dual_output_autoencoder_forward.1} parent=1 // pred_check
      _
    $region119: #{dual_output_autoencoder_forward.1} parent=1 // pred_check_branch
      %248 = sbr.rel (0) target = $region121
    $region120: #{dual_output_autoencoder_forward.1} parent=1 // pred_region
      %250 = dma.done [#allocation18], 8192
    $region121: #{dual_output_autoencoder_forward.1} parent=1 // pred_fallthru
      _
    // Predicated region
    $region122: #{dual_output_autoencoder_forward.1} parent=1 // pred_check
      _
    $region123: #{dual_output_autoencoder_forward.1} parent=1 // pred_check_branch
      %252 = sbr.rel (0) target = $region125
    $region124: #{dual_output_autoencoder_forward.1} parent=1 // pred_region
      %254 = dma.done [#allocation21], 4096
    $region125: #{dual_output_autoencoder_forward.1} parent=1 // pred_fallthru
      _
    // Predicated region
    $region126: #{dual_output_autoencoder_forward.1} parent=1 // pred_check
      _
    $region127: #{dual_output_autoencoder_forward.1} parent=1 // pred_check_branch
      %256 = sbr.rel (0) target = $region129
    $region128: #{dual_output_autoencoder_forward.1} parent=1 // pred_region
      %258 = dma.done [#allocation21], 1024
    $region129: #{dual_output_autoencoder_forward.1} parent=1 // pred_fallthru
      _
    %v260 = vld [vmem:[#allocation2] sm:$0xff]
    %v261 = vpack.c.bf16 %v260, %v260
    %v262 = vld [vmem:[#allocation5] sm:$0xff]
    %v263 = vld [vmem:[#allocation5 + $0x8] sm:$0xff]
    %v264 = vld [vmem:[#allocation5 + $0x10] sm:$0xff]
    %v265 = vld [vmem:[#allocation5 + $0x18] sm:$0xff]
    %v266 = vld [vmem:[#allocation5 + $0x20] sm:$0xff]
    %v267 = vld [vmem:[#allocation5 + $0x28] sm:$0xff]
    %v268 = vld [vmem:[#allocation5 + $0x30] sm:$0xff]
    %v269 = vld [vmem:[#allocation5 + $0x38] sm:$0xff]
    %v270 = vld [vmem:[#allocation7] sm:$0xf]
    %v272 = vperm.slane %v270, 0
    %v273 = vperm.slane %v270, 1
    %v274 = vperm.slane %v270, 2
    %v275 = vperm.slane %v270, 3
    %v288 = vunpack.c.l.b16 %v262
    %v289 = vunpack.c.h.b16 %v262
    %v290 = vunpack.c.l.b16 %v263
    %v291 = vunpack.c.h.b16 %v263
    %v292 = vunpack.c.l.b16 %v264
    %v293 = vunpack.c.h.b16 %v264
    %v294 = vunpack.c.l.b16 %v265
    %v295 = vunpack.c.h.b16 %v265
    %v296 = vunpack.c.l.b16 %v266
    %v297 = vunpack.c.h.b16 %v266
    %v298 = vunpack.c.l.b16 %v267
    %v299 = vunpack.c.h.b16 %v267
    %v300 = vunpack.c.l.b16 %v268
    %v301 = vunpack.c.h.b16 %v268
    %v302 = vunpack.c.l.b16 %v269
    %v303 = vunpack.c.h.b16 %v269
    %v304 = vpack.c.b16 %v292, %v288
    %v305 = vpack.c.b16 %v293, %v289
    %v306 = vpack.c.b16 %v294, %v290
    %v307 = vpack.c.b16 %v295, %v291
    %v308 = vpack.c.b16 %v300, %v296
    %v309 = vpack.c.b16 %v301, %v297
    %v310 = vpack.c.b16 %v302, %v298
    %v311 = vpack.c.b16 %v303, %v299
    %vm320 = vcmask 261120
    %v322 = vsel %vm320, %v261, 0
    %324 = vmatpush.bf16.msra.mxu0 0
    %325 = vmatpush.bf16.msra.mxu0 0
    %326 = vmatpush.bf16.msra.mxu0 0
    %327 = vmatpush.bf16.msra.mxu0 0
    %328 = vmatpush.bf16.msra.mxu0 0
    %329 = vmatpush.bf16.msra.mxu0 0
    %330 = vmatpush.bf16.msra.mxu0 %v308
    %331 = vmatpush.bf16.msra.mxu0 %v304
    %332 = vmatmul.bf16.gmra.mxu0 %v322
    %v333 = vpop.f32.mrf.mxu0
    %v334 = vadd.f32 %v272, %v333
    %v335 = vpop.f32.mrf.mxu0
    %336 = vdwg.mxu0
    %337 = vmatpush.bf16.msra.mxu0 0
    %338 = vmatpush.bf16.msra.mxu0 0
    %339 = vmatpush.bf16.msra.mxu0 0
    %340 = vmatpush.bf16.msra.mxu0 0
    %341 = vmatpush.bf16.msra.mxu0 0
    %342 = vmatpush.bf16.msra.mxu0 0
    %343 = vmatpush.bf16.msra.mxu0 %v309
    %344 = vmatpush.bf16.msra.mxu0 %v305
    %345 = vmatmul.bf16.gmra.mxu0 %v322
    %v346 = vpop.f32.mrf.mxu0
    %v347 = vadd.f32 %v273, %v346
    %v348 = vpop.f32.mrf.mxu0
    %349 = vdwg.mxu0
    %350 = vmatpush.bf16.msra.mxu0 0
    %351 = vmatpush.bf16.msra.mxu0 0
    %352 = vmatpush.bf16.msra.mxu0 0
    %353 = vmatpush.bf16.msra.mxu0 0
    %354 = vmatpush.bf16.msra.mxu0 0
    %355 = vmatpush.bf16.msra.mxu0 0
    %356 = vmatpush.bf16.msra.mxu0 %v310
    %357 = vmatpush.bf16.msra.mxu0 %v306
    %358 = vmatmul.bf16.gmra.mxu0 %v322
    %v359 = vpop.f32.mrf.mxu0
    %v360 = vadd.f32 %v274, %v359
    %v361 = vpop.f32.mrf.mxu0
    %362 = vdwg.mxu0
    %363 = vmatpush.bf16.msra.mxu0 0
    %364 = vmatpush.bf16.msra.mxu0 0
    %365 = vmatpush.bf16.msra.mxu0 0
    %366 = vmatpush.bf16.msra.mxu0 0
    %367 = vmatpush.bf16.msra.mxu0 0
    %368 = vmatpush.bf16.msra.mxu0 0
    %369 = vmatpush.bf16.msra.mxu0 %v311
    %370 = vmatpush.bf16.msra.mxu0 %v307
    %371 = vmatmul.bf16.gmra.mxu0 %v322
    %v372 = vpop.f32.mrf.mxu0
    %v373 = vadd.f32 %v275, %v372
    %v374 = vpop.f32.mrf.mxu0
    %375 = vdwg.mxu0
    %v376 = vmax.f32 %v334, 0.0
    %v377 = vmax.f32 %v347, 0.0
    %v378 = vmax.f32 %v360, 0.0
    %v379 = vmax.f32 %v373, 0.0
    %v380 = vpack.c.bf16 %v376, %v376
    %v381 = vpack.c.bf16 %v377, %v377
    %v382 = vpack.c.bf16 %v378, %v378
    %v383 = vpack.c.bf16 %v379, %v379
    %v384 = vld [vmem:[#allocation8] sm:$0xff]
    %v385 = vld [vmem:[#allocation8 + $0x8] sm:$0xff]
    %v386 = vld [vmem:[#allocation8 + $0x10] sm:$0xff]
    %v387 = vld [vmem:[#allocation8 + $0x18] sm:$0xff]
    %v388 = vld [vmem:[#allocation8 + $0x20] sm:$0xff]
    %v389 = vld [vmem:[#allocation8 + $0x28] sm:$0xff]
    %v390 = vld [vmem:[#allocation8 + $0x30] sm:$0xff]
    %v391 = vld [vmem:[#allocation8 + $0x38] sm:$0xff]
    %v392 = vld [vmem:[#allocation8 + $0x40] sm:$0xff]
    %v393 = vld [vmem:[#allocation8 + $0x48] sm:$0xff]
    %v394 = vld [vmem:[#allocation8 + $0x50] sm:$0xff]
    %v395 = vld [vmem:[#allocation8 + $0x58] sm:$0xff]
    %v396 = vld [vmem:[#allocation8 + $0x60] sm:$0xff]
    %v397 = vld [vmem:[#allocation8 + $0x68] sm:$0xff]
    %v398 = vld [vmem:[#allocation8 + $0x70] sm:$0xff]
    %v399 = vld [vmem:[#allocation8 + $0x78] sm:$0xff]
    %v400 = vld [vmem:[#allocation8 + $0x80] sm:$0xff]
    %v401 = vld [vmem:[#allocation8 + $0x88] sm:$0xff]
    %v402 = vld [vmem:[#allocation8 + $0x90] sm:$0xff]
    %v403 = vld [vmem:[#allocation8 + $0x98] sm:$0xff]
    %v404 = vld [vmem:[#allocation8 + $0xa0] sm:$0xff]
    %v405 = vld [vmem:[#allocation8 + $0xa8] sm:$0xff]
    %v406 = vld [vmem:[#allocation8 + $0xb0] sm:$0xff]
    %v407 = vld [vmem:[#allocation8 + $0xb8] sm:$0xff]
    %v408 = vld [vmem:[#allocation8 + $0xc0] sm:$0xff]
    %v409 = vld [vmem:[#allocation8 + $0xc8] sm:$0xff]
    %v410 = vld [vmem:[#allocation8 + $0xd0] sm:$0xff]
    %v411 = vld [vmem:[#allocation8 + $0xd8] sm:$0xff]
    %v412 = vld [vmem:[#allocation8 + $0xe0] sm:$0xff]
    %v413 = vld [vmem:[#allocation8 + $0xe8] sm:$0xff]
    %v414 = vld [vmem:[#allocation8 + $0xf0] sm:$0xff]
    %v415 = vld [vmem:[#allocation8 + $0xf8] sm:$0xff]
    %v416 = vld [vmem:[#allocation8 + $0x100] sm:$0xff]
    %v417 = vld [vmem:[#allocation8 + $0x108] sm:$0xff]
    %v418 = vld [vmem:[#allocation8 + $0x110] sm:$0xff]
    %v419 = vld [vmem:[#allocation8 + $0x118] sm:$0xff]
    %v420 = vld [vmem:[#allocation8 + $0x120] sm:$0xff]
    %v421 = vld [vmem:[#allocation8 + $0x128] sm:$0xff]
    %v422 = vld [vmem:[#allocation8 + $0x130] sm:$0xff]
    %v423 = vld [vmem:[#allocation8 + $0x138] sm:$0xff]
    %v424 = vld [vmem:[#allocation8 + $0x140] sm:$0xff]
    %v425 = vld [vmem:[#allocation8 + $0x148] sm:$0xff]
    %v426 = vld [vmem:[#allocation8 + $0x150] sm:$0xff]
    %v427 = vld [vmem:[#allocation8 + $0x158] sm:$0xff]
    %v428 = vld [vmem:[#allocation8 + $0x160] sm:$0xff]
    %v429 = vld [vmem:[#allocation8 + $0x168] sm:$0xff]
    %v430 = vld [vmem:[#allocation8 + $0x170] sm:$0xff]
    %v431 = vld [vmem:[#allocation8 + $0x178] sm:$0xff]
    %v432 = vld [vmem:[#allocation8 + $0x180] sm:$0xff]
    %v433 = vld [vmem:[#allocation8 + $0x188] sm:$0xff]
    %v434 = vld [vmem:[#allocation8 + $0x190] sm:$0xff]
    %v435 = vld [vmem:[#allocation8 + $0x198] sm:$0xff]
    %v436 = vld [vmem:[#allocation8 + $0x1a0] sm:$0xff]
    %v437 = vld [vmem:[#allocation8 + $0x1a8] sm:$0xff]
    %v438 = vld [vmem:[#allocation8 + $0x1b0] sm:$0xff]
    %v439 = vld [vmem:[#allocation8 + $0x1b8] sm:$0xff]
    %v440 = vld [vmem:[#allocation8 + $0x1c0] sm:$0xff]
    %v441 = vld [vmem:[#allocation8 + $0x1c8] sm:$0xff]
    %v442 = vld [vmem:[#allocation8 + $0x1d0] sm:$0xff]
    %v443 = vld [vmem:[#allocation8 + $0x1d8] sm:$0xff]
    %v444 = vld [vmem:[#allocation8 + $0x1e0] sm:$0xff]
    %v445 = vld [vmem:[#allocation8 + $0x1e8] sm:$0xff]
    %v446 = vld [vmem:[#allocation8 + $0x1f0] sm:$0xff]
    %v447 = vld [vmem:[#allocation8 + $0x1f8] sm:$0xff]
    %v448 = vld [vmem:[%s4] sm:$0x3]
    %v450 = vperm.slane %v448, 0
    %v451 = vperm.slane %v448, 1
    %v518 = vunpack.c.l.b16 %v384
    %v519 = vunpack.c.h.b16 %v384
    %v520 = vunpack.c.l.b16 %v385
    %v521 = vunpack.c.h.b16 %v385
    %v522 = vunpack.c.l.b16 %v386
    %v523 = vunpack.c.h.b16 %v386
    %v524 = vunpack.c.l.b16 %v387
    %v525 = vunpack.c.h.b16 %v387
    %v526 = vunpack.c.l.b16 %v388
    %v527 = vunpack.c.h.b16 %v388
    %v528 = vunpack.c.l.b16 %v389
    %v529 = vunpack.c.h.b16 %v389
    %v530 = vunpack.c.l.b16 %v390
    %v531 = vunpack.c.h.b16 %v390
    %v532 = vunpack.c.l.b16 %v391
    %v533 = vunpack.c.h.b16 %v391
    %v534 = vunpack.c.l.b16 %v392
    %v535 = vunpack.c.h.b16 %v392
    %v536 = vunpack.c.l.b16 %v393
    %v537 = vunpack.c.h.b16 %v393
    %v538 = vunpack.c.l.b16 %v394
    %v539 = vunpack.c.h.b16 %v394
    %v540 = vunpack.c.l.b16 %v395
    %v541 = vunpack.c.h.b16 %v395
    %v542 = vunpack.c.l.b16 %v396
    %v543 = vunpack.c.h.b16 %v396
    %v544 = vunpack.c.l.b16 %v397
    %v545 = vunpack.c.h.b16 %v397
    %v546 = vunpack.c.l.b16 %v398
    %v547 = vunpack.c.h.b16 %v398
    %v548 = vunpack.c.l.b16 %v399
    %v549 = vunpack.c.h.b16 %v399
    %v550 = vunpack.c.l.b16 %v400
    %v551 = vunpack.c.h.b16 %v400
    %v552 = vunpack.c.l.b16 %v401
    %v553 = vunpack.c.h.b16 %v401
    %v554 = vunpack.c.l.b16 %v402
    %v555 = vunpack.c.h.b16 %v402
    %v556 = vunpack.c.l.b16 %v403
    %v557 = vunpack.c.h.b16 %v403
    %v558 = vunpack.c.l.b16 %v404
    %v559 = vunpack.c.h.b16 %v404
    %v560 = vunpack.c.l.b16 %v405
    %v561 = vunpack.c.h.b16 %v405
    %v562 = vunpack.c.l.b16 %v406
    %v563 = vunpack.c.h.b16 %v406
    %v564 = vunpack.c.l.b16 %v407
    %v565 = vunpack.c.h.b16 %v407
    %v566 = vunpack.c.l.b16 %v408
    %v567 = vunpack.c.h.b16 %v408
    %v568 = vunpack.c.l.b16 %v409
    %v569 = vunpack.c.h.b16 %v409
    %v570 = vunpack.c.l.b16 %v410
    %v571 = vunpack.c.h.b16 %v410
    %v572 = vunpack.c.l.b16 %v411
    %v573 = vunpack.c.h.b16 %v411
    %v574 = vunpack.c.l.b16 %v412
    %v575 = vunpack.c.h.b16 %v412
    %v576 = vunpack.c.l.b16 %v413
    %v577 = vunpack.c.h.b16 %v413
    %v578 = vunpack.c.l.b16 %v414
    %v579 = vunpack.c.h.b16 %v414
    %v580 = vunpack.c.l.b16 %v415
    %v581 = vunpack.c.h.b16 %v415
    %v582 = vunpack.c.l.b16 %v416
    %v583 = vunpack.c.h.b16 %v416
    %v584 = vunpack.c.l.b16 %v417
    %v585 = vunpack.c.h.b16 %v417
    %v586 = vunpack.c.l.b16 %v418
    %v587 = vunpack.c.h.b16 %v418
    %v588 = vunpack.c.l.b16 %v419
    %v589 = vunpack.c.h.b16 %v419
    %v590 = vunpack.c.l.b16 %v420
    %v591 = vunpack.c.h.b16 %v420
    %v592 = vunpack.c.l.b16 %v421
    %v593 = vunpack.c.h.b16 %v421
    %v594 = vunpack.c.l.b16 %v422
    %v595 = vunpack.c.h.b16 %v422
    %v596 = vunpack.c.l.b16 %v423
    %v597 = vunpack.c.h.b16 %v423
    %v598 = vunpack.c.l.b16 %v424
    %v599 = vunpack.c.h.b16 %v424
    %v600 = vunpack.c.l.b16 %v425
    %v601 = vunpack.c.h.b16 %v425
    %v602 = vunpack.c.l.b16 %v426
    %v603 = vunpack.c.h.b16 %v426
    %v604 = vunpack.c.l.b16 %v427
    %v605 = vunpack.c.h.b16 %v427
    %v606 = vunpack.c.l.b16 %v428
    %v607 = vunpack.c.h.b16 %v428
    %v608 = vunpack.c.l.b16 %v429
    %v609 = vunpack.c.h.b16 %v429
    %v610 = vunpack.c.l.b16 %v430
    %v611 = vunpack.c.h.b16 %v430
    %v612 = vunpack.c.l.b16 %v431
    %v613 = vunpack.c.h.b16 %v431
    %v614 = vunpack.c.l.b16 %v432
    %v615 = vunpack.c.h.b16 %v432
    %v616 = vunpack.c.l.b16 %v433
    %v617 = vunpack.c.h.b16 %v433
    %v618 = vunpack.c.l.b16 %v434
    %v619 = vunpack.c.h.b16 %v434
    %v620 = vunpack.c.l.b16 %v435
    %v621 = vunpack.c.h.b16 %v435
    %v622 = vunpack.c.l.b16 %v436
    %v623 = vunpack.c.h.b16 %v436
    %v624 = vunpack.c.l.b16 %v437
    %v625 = vunpack.c.h.b16 %v437
    %v626 = vunpack.c.l.b16 %v438
    %v627 = vunpack.c.h.b16 %v438
    %v628 = vunpack.c.l.b16 %v439
    %v629 = vunpack.c.h.b16 %v439
    %v630 = vunpack.c.l.b16 %v440
    %v631 = vunpack.c.h.b16 %v440
    %v632 = vunpack.c.l.b16 %v441
    %v633 = vunpack.c.h.b16 %v441
    %v634 = vunpack.c.l.b16 %v442
    %v635 = vunpack.c.h.b16 %v442
    %v636 = vunpack.c.l.b16 %v443
    %v637 = vunpack.c.h.b16 %v443
    %v638 = vunpack.c.l.b16 %v444
    %v639 = vunpack.c.h.b16 %v444
    %v640 = vunpack.c.l.b16 %v445
    %v641 = vunpack.c.h.b16 %v445
    %v642 = vunpack.c.l.b16 %v446
    %v643 = vunpack.c.h.b16 %v446
    %v644 = vunpack.c.l.b16 %v447
    %v645 = vunpack.c.h.b16 %v447
    %v646 = vpack.c.b16 %v520, %v518
    %v647 = vpack.c.b16 %v521, %v519
    %v648 = vpack.c.b16 %v524, %v522
    %v649 = vpack.c.b16 %v525, %v523
    %v650 = vpack.c.b16 %v528, %v526
    %v651 = vpack.c.b16 %v529, %v527
    %v652 = vpack.c.b16 %v532, %v530
    %v653 = vpack.c.b16 %v533, %v531
    %v654 = vpack.c.b16 %v536, %v534
    %v655 = vpack.c.b16 %v537, %v535
    %v656 = vpack.c.b16 %v540, %v538
    %v657 = vpack.c.b16 %v541, %v539
    %v658 = vpack.c.b16 %v544, %v542
    %v659 = vpack.c.b16 %v545, %v543
    %v660 = vpack.c.b16 %v548, %v546
    %v661 = vpack.c.b16 %v549, %v547
    %v662 = vpack.c.b16 %v552, %v550
    %v663 = vpack.c.b16 %v553, %v551
    %v664 = vpack.c.b16 %v556, %v554
    %v665 = vpack.c.b16 %v557, %v555
    %v666 = vpack.c.b16 %v560, %v558
    %v667 = vpack.c.b16 %v561, %v559
    %v668 = vpack.c.b16 %v564, %v562
    %v669 = vpack.c.b16 %v565, %v563
    %v670 = vpack.c.b16 %v568, %v566
    %v671 = vpack.c.b16 %v569, %v567
    %v672 = vpack.c.b16 %v572, %v570
    %v673 = vpack.c.b16 %v573, %v571
    %v674 = vpack.c.b16 %v576, %v574
    %v675 = vpack.c.b16 %v577, %v575
    %v676 = vpack.c.b16 %v580, %v578
    %v677 = vpack.c.b16 %v581, %v579
    %v678 = vpack.c.b16 %v584, %v582
    %v679 = vpack.c.b16 %v585, %v583
    %v680 = vpack.c.b16 %v588, %v586
    %v681 = vpack.c.b16 %v589, %v587
    %v682 = vpack.c.b16 %v592, %v590
    %v683 = vpack.c.b16 %v593, %v591
    %v684 = vpack.c.b16 %v596, %v594
    %v685 = vpack.c.b16 %v597, %v595
    %v686 = vpack.c.b16 %v600, %v598
    %v687 = vpack.c.b16 %v601, %v599
    %v688 = vpack.c.b16 %v604, %v602
    %v689 = vpack.c.b16 %v605, %v603
    %v690 = vpack.c.b16 %v608, %v606
    %v691 = vpack.c.b16 %v609, %v607
    %v692 = vpack.c.b16 %v612, %v610
    %v693 = vpack.c.b16 %v613, %v611
    %v694 = vpack.c.b16 %v616, %v614
    %v695 = vpack.c.b16 %v617, %v615
    %v696 = vpack.c.b16 %v620, %v618
    %v697 = vpack.c.b16 %v621, %v619
    %v698 = vpack.c.b16 %v624, %v622
    %v699 = vpack.c.b16 %v625, %v623
    %v700 = vpack.c.b16 %v628, %v626
    %v701 = vpack.c.b16 %v629, %v627
    %v702 = vpack.c.b16 %v632, %v630
    %v703 = vpack.c.b16 %v633, %v631
    %v704 = vpack.c.b16 %v636, %v634
    %v705 = vpack.c.b16 %v637, %v635
    %v706 = vpack.c.b16 %v640, %v638
    %v707 = vpack.c.b16 %v641, %v639
    %v708 = vpack.c.b16 %v644, %v642
    %v709 = vpack.c.b16 %v645, %v643
    %774 = vmatpush.bf16.msra.mxu0 %v660
    %775 = vmatpush.bf16.msra.mxu0 %v658
    %776 = vmatpush.bf16.msra.mxu0 %v656
    %777 = vmatpush.bf16.msra.mxu0 %v654
    %778 = vmatpush.bf16.msra.mxu0 %v652
    %779 = vmatpush.bf16.msra.mxu0 %v650
    %780 = vmatpush.bf16.msra.mxu0 %v648
    %781 = vmatpush.bf16.msra.mxu0 %v646
    %782 = vmatmul.bf16.gmra.mxu0 %v380
    %v783 = vpop.f32.mrf.mxu0
    %v784 = vadd.f32 %v450, %v783
    %v785 = vpop.f32.mrf.mxu0
    %786 = vdwg.mxu0
    %787 = vmatpush.bf16.msra.mxu0 %v676
    %788 = vmatpush.bf16.msra.mxu0 %v674
    %789 = vmatpush.bf16.msra.mxu0 %v672
    %790 = vmatpush.bf16.msra.mxu0 %v670
    %791 = vmatpush.bf16.msra.mxu0 %v668
    %792 = vmatpush.bf16.msra.mxu0 %v666
    %793 = vmatpush.bf16.msra.mxu0 %v664
    %794 = vmatpush.bf16.msra.mxu0 %v662
    %795 = vmatmul.bf16.gmra.mxu0 %v381
    %v796 = vpop.f32.mrf.mxu0
    %v797 = vadd.f32 %v784, %v796
    %v798 = vpop.f32.mrf.mxu0
    %799 = vdwg.mxu0
    %800 = vmatpush.bf16.msra.mxu0 %v692
    %801 = vmatpush.bf16.msra.mxu0 %v690
    %802 = vmatpush.bf16.msra.mxu0 %v688
    %803 = vmatpush.bf16.msra.mxu0 %v686
    %804 = vmatpush.bf16.msra.mxu0 %v684
    %805 = vmatpush.bf16.msra.mxu0 %v682
    %806 = vmatpush.bf16.msra.mxu0 %v680
    %807 = vmatpush.bf16.msra.mxu0 %v678
    %808 = vmatmul.bf16.gmra.mxu0 %v382
    %v809 = vpop.f32.mrf.mxu0
    %v810 = vadd.f32 %v797, %v809
    %v811 = vpop.f32.mrf.mxu0
    %812 = vdwg.mxu0
    %813 = vmatpush.bf16.msra.mxu0 %v708
    %814 = vmatpush.bf16.msra.mxu0 %v706
    %815 = vmatpush.bf16.msra.mxu0 %v704
    %816 = vmatpush.bf16.msra.mxu0 %v702
    %817 = vmatpush.bf16.msra.mxu0 %v700
    %818 = vmatpush.bf16.msra.mxu0 %v698
    %819 = vmatpush.bf16.msra.mxu0 %v696
    %820 = vmatpush.bf16.msra.mxu0 %v694
    %821 = vmatmul.bf16.gmra.mxu0 %v383
    %v822 = vpop.f32.mrf.mxu0
    %v823 = vadd.f32 %v810, %v822
    %v824 = vpop.f32.mrf.mxu0
    %825 = vdwg.mxu0
    %826 = vmatpush.bf16.msra.mxu0 %v661
    %827 = vmatpush.bf16.msra.mxu0 %v659
    %828 = vmatpush.bf16.msra.mxu0 %v657
    %829 = vmatpush.bf16.msra.mxu0 %v655
    %830 = vmatpush.bf16.msra.mxu0 %v653
    %831 = vmatpush.bf16.msra.mxu0 %v651
    %832 = vmatpush.bf16.msra.mxu0 %v649
    %833 = vmatpush.bf16.msra.mxu0 %v647
    %834 = vmatmul.bf16.gmra.mxu0 %v380
    %v835 = vpop.f32.mrf.mxu0
    %v836 = vadd.f32 %v451, %v835
    %v837 = vpop.f32.mrf.mxu0
    %838 = vdwg.mxu0
    %839 = vmatpush.bf16.msra.mxu0 %v677
    %840 = vmatpush.bf16.msra.mxu0 %v675
    %841 = vmatpush.bf16.msra.mxu0 %v673
    %842 = vmatpush.bf16.msra.mxu0 %v671
    %843 = vmatpush.bf16.msra.mxu0 %v669
    %844 = vmatpush.bf16.msra.mxu0 %v667
    %845 = vmatpush.bf16.msra.mxu0 %v665
    %846 = vmatpush.bf16.msra.mxu0 %v663
    %847 = vmatmul.bf16.gmra.mxu0 %v381
    %v848 = vpop.f32.mrf.mxu0
    %v849 = vadd.f32 %v836, %v848
    %v850 = vpop.f32.mrf.mxu0
    %851 = vdwg.mxu0
    %852 = vmatpush.bf16.msra.mxu0 %v693
    %853 = vmatpush.bf16.msra.mxu0 %v691
    %854 = vmatpush.bf16.msra.mxu0 %v689
    %855 = vmatpush.bf16.msra.mxu0 %v687
    %856 = vmatpush.bf16.msra.mxu0 %v685
    %857 = vmatpush.bf16.msra.mxu0 %v683
    %858 = vmatpush.bf16.msra.mxu0 %v681
    %859 = vmatpush.bf16.msra.mxu0 %v679
    %860 = vmatmul.bf16.gmra.mxu0 %v382
    %v861 = vpop.f32.mrf.mxu0
    %v862 = vadd.f32 %v849, %v861
    %v863 = vpop.f32.mrf.mxu0
    %864 = vdwg.mxu0
    %865 = vmatpush.bf16.msra.mxu0 %v709
    %866 = vmatpush.bf16.msra.mxu0 %v707
    %867 = vmatpush.bf16.msra.mxu0 %v705
    %868 = vmatpush.bf16.msra.mxu0 %v703
    %869 = vmatpush.bf16.msra.mxu0 %v701
    %870 = vmatpush.bf16.msra.mxu0 %v699
    %871 = vmatpush.bf16.msra.mxu0 %v697
    %872 = vmatpush.bf16.msra.mxu0 %v695
    %873 = vmatmul.bf16.gmra.mxu0 %v383
    %v874 = vpop.f32.mrf.mxu0
    %v875 = vadd.f32 %v862, %v874
    %v876 = vpop.f32.mrf.mxu0
    %877 = vdwg.mxu0
    %v878 = vmax.f32 %v823, 0.0
    %v879 = vmax.f32 %v875, 0.0
    %v880 = vpack.c.bf16 %v878, %v878
    %v881 = vpack.c.bf16 %v879, %v879
    %v882 = vld [vmem:[#allocation10] sm:$0xf]
    %v883 = vld [vmem:[#allocation10 + $0x4] sm:$0xf]
    %v884 = vld [vmem:[#allocation10 + $0x8] sm:$0xf]
    %v885 = vld [vmem:[#allocation10 + $0xc] sm:$0xf]
    %v886 = vld [vmem:[#allocation10 + $0x10] sm:$0xf]
    %v887 = vld [vmem:[#allocation10 + $0x14] sm:$0xf]
    %v888 = vld [vmem:[#allocation10 + $0x18] sm:$0xf]
    %v889 = vld [vmem:[#allocation10 + $0x1c] sm:$0xf]
    %v890 = vld [vmem:[#allocation10 + $0x20] sm:$0xf]
    %v891 = vld [vmem:[#allocation10 + $0x24] sm:$0xf]
    %v892 = vld [vmem:[#allocation10 + $0x28] sm:$0xf]
    %v893 = vld [vmem:[#allocation10 + $0x2c] sm:$0xf]
    %v894 = vld [vmem:[#allocation10 + $0x30] sm:$0xf]
    %v895 = vld [vmem:[#allocation10 + $0x34] sm:$0xf]
    %v896 = vld [vmem:[#allocation10 + $0x38] sm:$0xf]
    %v897 = vld [vmem:[#allocation10 + $0x3c] sm:$0xf]
    %v898 = vld [vmem:[#allocation10 + $0x40] sm:$0xf]
    %v899 = vld [vmem:[#allocation10 + $0x44] sm:$0xf]
    %v900 = vld [vmem:[#allocation10 + $0x48] sm:$0xf]
    %v901 = vld [vmem:[#allocation10 + $0x4c] sm:$0xf]
    %v902 = vld [vmem:[#allocation10 + $0x50] sm:$0xf]
    %v903 = vld [vmem:[#allocation10 + $0x54] sm:$0xf]
    %v904 = vld [vmem:[#allocation10 + $0x58] sm:$0xf]
    %v905 = vld [vmem:[#allocation10 + $0x5c] sm:$0xf]
    %v906 = vld [vmem:[#allocation10 + $0x60] sm:$0xf]
    %v907 = vld [vmem:[#allocation10 + $0x64] sm:$0xf]
    %v908 = vld [vmem:[#allocation10 + $0x68] sm:$0xf]
    %v909 = vld [vmem:[#allocation10 + $0x6c] sm:$0xf]
    %v910 = vld [vmem:[#allocation10 + $0x70] sm:$0xf]
    %v911 = vld [vmem:[#allocation10 + $0x74] sm:$0xf]
    %v912 = vld [vmem:[#allocation10 + $0x78] sm:$0xf]
    %v913 = vld [vmem:[#allocation10 + $0x7c] sm:$0xf]
    %v914 = vld [vmem:[#allocation11] sm:$0x1]
    %v916 = vperm.slane %v914, 0
    %v950 = vunpack.c.l.b16 %v882
    %v951 = vunpack.c.l.b16 %v883
    %v952 = vunpack.c.l.b16 %v884
    %v953 = vunpack.c.l.b16 %v885
    %v954 = vunpack.c.l.b16 %v886
    %v955 = vunpack.c.l.b16 %v887
    %v956 = vunpack.c.l.b16 %v888
    %v957 = vunpack.c.l.b16 %v889
    %v958 = vunpack.c.l.b16 %v890
    %v959 = vunpack.c.l.b16 %v891
    %v960 = vunpack.c.l.b16 %v892
    %v961 = vunpack.c.l.b16 %v893
    %v962 = vunpack.c.l.b16 %v894
    %v963 = vunpack.c.l.b16 %v895
    %v964 = vunpack.c.l.b16 %v896
    %v965 = vunpack.c.l.b16 %v897
    %v966 = vunpack.c.l.b16 %v898
    %v967 = vunpack.c.l.b16 %v899
    %v968 = vunpack.c.l.b16 %v900
    %v969 = vunpack.c.l.b16 %v901
    %v970 = vunpack.c.l.b16 %v902
    %v971 = vunpack.c.l.b16 %v903
    %v972 = vunpack.c.l.b16 %v904
    %v973 = vunpack.c.l.b16 %v905
    %v974 = vunpack.c.l.b16 %v906
    %v975 = vunpack.c.l.b16 %v907
    %v976 = vunpack.c.l.b16 %v908
    %v977 = vunpack.c.l.b16 %v909
    %v978 = vunpack.c.l.b16 %v910
    %v979 = vunpack.c.l.b16 %v911
    %v980 = vunpack.c.l.b16 %v912
    %v981 = vunpack.c.l.b16 %v913
    %v982 = vpack.c.b16 %v951, %v950
    %v983 = vpack.c.b16 %v953, %v952
    %v984 = vpack.c.b16 %v955, %v954
    %v985 = vpack.c.b16 %v957, %v956
    %v986 = vpack.c.b16 %v959, %v958
    %v987 = vpack.c.b16 %v961, %v960
    %v988 = vpack.c.b16 %v963, %v962
    %v989 = vpack.c.b16 %v965, %v964
    %v990 = vpack.c.b16 %v967, %v966
    %v991 = vpack.c.b16 %v969, %v968
    %v992 = vpack.c.b16 %v971, %v970
    %v993 = vpack.c.b16 %v973, %v972
    %v994 = vpack.c.b16 %v975, %v974
    %v995 = vpack.c.b16 %v977, %v976
    %v996 = vpack.c.b16 %v979, %v978
    %v997 = vpack.c.b16 %v981, %v980
    %1014 = vmatpush.bf16.msra.mxu0 %v989
    %1015 = vmatpush.bf16.msra.mxu0 %v988
    %1016 = vmatpush.bf16.msra.mxu0 %v987
    %1017 = vmatpush.bf16.msra.mxu0 %v986
    %1018 = vmatpush.bf16.msra.mxu0 %v985
    %1019 = vmatpush.bf16.msra.mxu0 %v984
    %1020 = vmatpush.bf16.msra.mxu0 %v983
    %1021 = vmatpush.bf16.msra.mxu0 %v982
    %1022 = vmatmul.bf16.gmra.mxu0 %v880
    %v1023 = vpop.f32.mrf.mxu0
    %v1024 = vadd.f32 %v916, %v1023
    %v1025 = vpop.f32.mrf.mxu0
    %1026 = vdwg.mxu0
    %1027 = vmatpush.bf16.msra.mxu0 %v997
    %1028 = vmatpush.bf16.msra.mxu0 %v996
    %1029 = vmatpush.bf16.msra.mxu0 %v995
    %1030 = vmatpush.bf16.msra.mxu0 %v994
    %1031 = vmatpush.bf16.msra.mxu0 %v993
    %1032 = vmatpush.bf16.msra.mxu0 %v992
    %1033 = vmatpush.bf16.msra.mxu0 %v991
    %1034 = vmatpush.bf16.msra.mxu0 %v990
    %1035 = vmatmul.bf16.gmra.mxu0 %v881
    %v1036 = vpop.f32.mrf.mxu0
    %v1037 = vadd.f32 %v1024, %v1036
    %v1038 = vpop.f32.mrf.mxu0
    %1039 = vdwg.mxu0
    %v1040 = vmax.f32 %v1037, 0.0
    %v1041 = vpack.c.bf16 %v1040, %v1040
    %v1042 = vld [vmem:[#allocation13] sm:$0xf]
    %v1043 = vld [vmem:[#allocation13 + $0x4] sm:$0xf]
    %v1044 = vld [vmem:[#allocation13 + $0x8] sm:$0xf]
    %v1045 = vld [vmem:[#allocation13 + $0xc] sm:$0xf]
    %v1046 = vld [vmem:[#allocation13 + $0x10] sm:$0xf]
    %v1047 = vld [vmem:[#allocation13 + $0x14] sm:$0xf]
    %v1048 = vld [vmem:[#allocation13 + $0x18] sm:$0xf]
    %v1049 = vld [vmem:[#allocation13 + $0x1c] sm:$0xf]
    %v1050 = vld [vmem:[#allocation13 + $0x20] sm:$0xf]
    %v1051 = vld [vmem:[#allocation13 + $0x24] sm:$0xf]
    %v1052 = vld [vmem:[#allocation13 + $0x28] sm:$0xf]
    %v1053 = vld [vmem:[#allocation13 + $0x2c] sm:$0xf]
    %v1054 = vld [vmem:[#allocation13 + $0x30] sm:$0xf]
    %v1055 = vld [vmem:[#allocation13 + $0x34] sm:$0xf]
    %v1056 = vld [vmem:[#allocation13 + $0x38] sm:$0xf]
    %v1057 = vld [vmem:[#allocation13 + $0x3c] sm:$0xf]
    %v1058 = vld [vmem:[#allocation14] sm:$0x1]
    %v1060 = vperm.slane %v1058, 0
    %v1078 = vunpack.c.l.b16 %v1042
    %v1079 = vunpack.c.l.b16 %v1043
    %v1080 = vunpack.c.l.b16 %v1044
    %v1081 = vunpack.c.l.b16 %v1045
    %v1082 = vunpack.c.l.b16 %v1046
    %v1083 = vunpack.c.l.b16 %v1047
    %v1084 = vunpack.c.l.b16 %v1048
    %v1085 = vunpack.c.l.b16 %v1049
    %v1086 = vunpack.c.l.b16 %v1050
    %v1087 = vunpack.c.l.b16 %v1051
    %v1088 = vunpack.c.l.b16 %v1052
    %v1089 = vunpack.c.l.b16 %v1053
    %v1090 = vunpack.c.l.b16 %v1054
    %v1091 = vunpack.c.l.b16 %v1055
    %v1092 = vunpack.c.l.b16 %v1056
    %v1093 = vunpack.c.l.b16 %v1057
    %v1094 = vpack.c.b16 %v1079, %v1078
    %v1095 = vpack.c.b16 %v1081, %v1080
    %v1096 = vpack.c.b16 %v1083, %v1082
    %v1097 = vpack.c.b16 %v1085, %v1084
    %v1098 = vpack.c.b16 %v1087, %v1086
    %v1099 = vpack.c.b16 %v1089, %v1088
    %v1100 = vpack.c.b16 %v1091, %v1090
    %v1101 = vpack.c.b16 %v1093, %v1092
    %1110 = vmatpush.bf16.msra.mxu0 %v1101
    %1111 = vmatpush.bf16.msra.mxu0 %v1100
    %1112 = vmatpush.bf16.msra.mxu0 %v1099
    %1113 = vmatpush.bf16.msra.mxu0 %v1098
    %1114 = vmatpush.bf16.msra.mxu0 %v1097
    %1115 = vmatpush.bf16.msra.mxu0 %v1096
    %1116 = vmatpush.bf16.msra.mxu0 %v1095
    %1117 = vmatpush.bf16.msra.mxu0 %v1094
    %1118 = vmatmul.bf16.gmra.mxu0 %v1041
    %v1119 = vpop.f32.mrf.mxu0
    %v1120 = vadd.f32 %v1060, %v1119
    %v1121 = vpop.f32.mrf.mxu0
    %1122 = vdwg.mxu0
    %v1123 = vpack.c.bf16 %v1120, %v1120
    %v1124 = vld [vmem:[#allocation16] sm:$0xff]
    %v1125 = vld [vmem:[#allocation16 + $0x8] sm:$0xff]
    %v1126 = vld [vmem:[#allocation16 + $0x10] sm:$0xff]
    %v1127 = vld [vmem:[#allocation16 + $0x18] sm:$0xff]
    %v1128 = vld [vmem:[#allocation16 + $0x20] sm:$0xff]
    %v1129 = vld [vmem:[#allocation16 + $0x28] sm:$0xff]
    %v1130 = vld [vmem:[#allocation16 + $0x30] sm:$0xff]
    %v1131 = vld [vmem:[#allocation16 + $0x38] sm:$0xff]
    %v1132 = vld [vmem:[#allocation16 + $0x40] sm:$0xff]
    %v1133 = vld [vmem:[#allocation16 + $0x48] sm:$0xff]
    %v1134 = vld [vmem:[#allocation16 + $0x50] sm:$0xff]
    %v1135 = vld [vmem:[#allocation16 + $0x58] sm:$0xff]
    %v1136 = vld [vmem:[#allocation16 + $0x60] sm:$0xff]
    %v1137 = vld [vmem:[#allocation16 + $0x68] sm:$0xff]
    %v1138 = vld [vmem:[#allocation16 + $0x70] sm:$0xff]
    %v1139 = vld [vmem:[#allocation16 + $0x78] sm:$0xff]
    %v1140 = vld [vmem:[%s10] sm:$0x3]
    %v1142 = vperm.slane %v1140, 0
    %v1143 = vperm.slane %v1140, 1
    %v1162 = vunpack.c.l.b16 %v1124
    %v1163 = vunpack.c.h.b16 %v1124
    %v1164 = vunpack.c.l.b16 %v1125
    %v1165 = vunpack.c.h.b16 %v1125
    %v1166 = vunpack.c.l.b16 %v1126
    %v1167 = vunpack.c.h.b16 %v1126
    %v1168 = vunpack.c.l.b16 %v1127
    %v1169 = vunpack.c.h.b16 %v1127
    %v1170 = vunpack.c.l.b16 %v1128
    %v1171 = vunpack.c.h.b16 %v1128
    %v1172 = vunpack.c.l.b16 %v1129
    %v1173 = vunpack.c.h.b16 %v1129
    %v1174 = vunpack.c.l.b16 %v1130
    %v1175 = vunpack.c.h.b16 %v1130
    %v1176 = vunpack.c.l.b16 %v1131
    %v1177 = vunpack.c.h.b16 %v1131
    %v1178 = vunpack.c.l.b16 %v1132
    %v1179 = vunpack.c.h.b16 %v1132
    %v1180 = vunpack.c.l.b16 %v1133
    %v1181 = vunpack.c.h.b16 %v1133
    %v1182 = vunpack.c.l.b16 %v1134
    %v1183 = vunpack.c.h.b16 %v1134
    %v1184 = vunpack.c.l.b16 %v1135
    %v1185 = vunpack.c.h.b16 %v1135
    %v1186 = vunpack.c.l.b16 %v1136
    %v1187 = vunpack.c.h.b16 %v1136
    %v1188 = vunpack.c.l.b16 %v1137
    %v1189 = vunpack.c.h.b16 %v1137
    %v1190 = vunpack.c.l.b16 %v1138
    %v1191 = vunpack.c.h.b16 %v1138
    %v1192 = vunpack.c.l.b16 %v1139
    %v1193 = vunpack.c.h.b16 %v1139
    %v1194 = vpack.c.b16 %v1164, %v1162
    %v1195 = vpack.c.b16 %v1165, %v1163
    %v1196 = vpack.c.b16 %v1168, %v1166
    %v1197 = vpack.c.b16 %v1169, %v1167
    %v1198 = vpack.c.b16 %v1172, %v1170
    %v1199 = vpack.c.b16 %v1173, %v1171
    %v1200 = vpack.c.b16 %v1176, %v1174
    %v1201 = vpack.c.b16 %v1177, %v1175
    %v1202 = vpack.c.b16 %v1180, %v1178
    %v1203 = vpack.c.b16 %v1181, %v1179
    %v1204 = vpack.c.b16 %v1184, %v1182
    %v1205 = vpack.c.b16 %v1185, %v1183
    %v1206 = vpack.c.b16 %v1188, %v1186
    %v1207 = vpack.c.b16 %v1189, %v1187
    %v1208 = vpack.c.b16 %v1192, %v1190
    %v1209 = vpack.c.b16 %v1193, %v1191
    %1226 = vmatpush.bf16.msra.mxu0 %v1208
    %1227 = vmatpush.bf16.msra.mxu0 %v1206
    %1228 = vmatpush.bf16.msra.mxu0 %v1204
    %1229 = vmatpush.bf16.msra.mxu0 %v1202
    %1230 = vmatpush.bf16.msra.mxu0 %v1200
    %1231 = vmatpush.bf16.msra.mxu0 %v1198
    %1232 = vmatpush.bf16.msra.mxu0 %v1196
    %1233 = vmatpush.bf16.msra.mxu0 %v1194
    %1234 = vmatmul.bf16.gmra.mxu0 %v1123
    %v1235 = vpop.f32.mrf.mxu0
    %v1236 = vadd.f32 %v1142, %v1235
    %v1237 = vpop.f32.mrf.mxu0
    %1238 = vdwg.mxu0
    %1239 = vmatpush.bf16.msra.mxu0 %v1209
    %1240 = vmatpush.bf16.msra.mxu0 %v1207
    %1241 = vmatpush.bf16.msra.mxu0 %v1205
    %1242 = vmatpush.bf16.msra.mxu0 %v1203
    %1243 = vmatpush.bf16.msra.mxu0 %v1201
    %1244 = vmatpush.bf16.msra.mxu0 %v1199
    %1245 = vmatpush.bf16.msra.mxu0 %v1197
    %1246 = vmatpush.bf16.msra.mxu0 %v1195
    %1247 = vmatmul.bf16.gmra.mxu0 %v1123
    %v1248 = vpop.f32.mrf.mxu0
    %v1249 = vadd.f32 %v1143, %v1248
    %v1250 = vpop.f32.mrf.mxu0
    %1251 = vdwg.mxu0
    %v1252 = vmax.f32 %v1236, 0.0
    %v1253 = vmax.f32 %v1249, 0.0
    %v1254 = vpack.c.bf16 %v1252, %v1252
    %v1255 = vld [vmem:[#allocation17] sm:$0xff]
    %v1256 = vld [vmem:[#allocation17 + $0x8] sm:$0xff]
    %v1257 = vld [vmem:[#allocation17 + $0x10] sm:$0xff]
    %v1258 = vld [vmem:[#allocation17 + $0x18] sm:$0xff]
    %v1259 = vld [vmem:[#allocation17 + $0x20] sm:$0xff]
    %v1260 = vld [vmem:[#allocation17 + $0x28] sm:$0xff]
    %v1261 = vld [vmem:[#allocation17 + $0x30] sm:$0xff]
    %v1262 = vld [vmem:[#allocation17 + $0x38] sm:$0xff]
    %v1263 = vld [vmem:[#allocation17 + $0x40] sm:$0xff]
    %v1264 = vld [vmem:[#allocation17 + $0x48] sm:$0xff]
    %v1265 = vld [vmem:[#allocation17 + $0x50] sm:$0xff]
    %v1266 = vld [vmem:[#allocation17 + $0x58] sm:$0xff]
    %v1267 = vld [vmem:[#allocation17 + $0x60] sm:$0xff]
    %v1268 = vld [vmem:[#allocation17 + $0x68] sm:$0xff]
    %v1269 = vld [vmem:[#allocation17 + $0x70] sm:$0xff]
    %v1270 = vld [vmem:[#allocation17 + $0x78] sm:$0xff]
    %v1271 = vld [vmem:[%s12] sm:$0x3]
    %v1273 = vperm.slane %v1271, 0
    %v1274 = vperm.slane %v1271, 1
    %v1293 = vunpack.c.l.b16 %v1255
    %v1294 = vunpack.c.h.b16 %v1255
    %v1295 = vunpack.c.l.b16 %v1256
    %v1296 = vunpack.c.h.b16 %v1256
    %v1297 = vunpack.c.l.b16 %v1257
    %v1298 = vunpack.c.h.b16 %v1257
    %v1299 = vunpack.c.l.b16 %v1258
    %v1300 = vunpack.c.h.b16 %v1258
    %v1301 = vunpack.c.l.b16 %v1259
    %v1302 = vunpack.c.h.b16 %v1259
    %v1303 = vunpack.c.l.b16 %v1260
    %v1304 = vunpack.c.h.b16 %v1260
    %v1305 = vunpack.c.l.b16 %v1261
    %v1306 = vunpack.c.h.b16 %v1261
    %v1307 = vunpack.c.l.b16 %v1262
    %v1308 = vunpack.c.h.b16 %v1262
    %v1309 = vunpack.c.l.b16 %v1263
    %v1310 = vunpack.c.h.b16 %v1263
    %v1311 = vunpack.c.l.b16 %v1264
    %v1312 = vunpack.c.h.b16 %v1264
    %v1313 = vunpack.c.l.b16 %v1265
    %v1314 = vunpack.c.h.b16 %v1265
    %v1315 = vunpack.c.l.b16 %v1266
    %v1316 = vunpack.c.h.b16 %v1266
    %v1317 = vunpack.c.l.b16 %v1267
    %v1318 = vunpack.c.h.b16 %v1267
    %v1319 = vunpack.c.l.b16 %v1268
    %v1320 = vunpack.c.h.b16 %v1268
    %v1321 = vunpack.c.l.b16 %v1269
    %v1322 = vunpack.c.h.b16 %v1269
    %v1323 = vunpack.c.l.b16 %v1270
    %v1324 = vunpack.c.h.b16 %v1270
    %v1325 = vpack.c.b16 %v1295, %v1293
    %v1326 = vpack.c.b16 %v1296, %v1294
    %v1327 = vpack.c.b16 %v1299, %v1297
    %v1328 = vpack.c.b16 %v1300, %v1298
    %v1329 = vpack.c.b16 %v1303, %v1301
    %v1330 = vpack.c.b16 %v1304, %v1302
    %v1331 = vpack.c.b16 %v1307, %v1305
    %v1332 = vpack.c.b16 %v1308, %v1306
    %v1333 = vpack.c.b16 %v1311, %v1309
    %v1334 = vpack.c.b16 %v1312, %v1310
    %v1335 = vpack.c.b16 %v1315, %v1313
    %v1336 = vpack.c.b16 %v1316, %v1314
    %v1337 = vpack.c.b16 %v1319, %v1317
    %v1338 = vpack.c.b16 %v1320, %v1318
    %v1339 = vpack.c.b16 %v1323, %v1321
    %v1340 = vpack.c.b16 %v1324, %v1322
    %1357 = vmatpush.bf16.msra.mxu0 %v1339
    %1358 = vmatpush.bf16.msra.mxu0 %v1337
    %1359 = vmatpush.bf16.msra.mxu0 %v1335
    %1360 = vmatpush.bf16.msra.mxu0 %v1333
    %1361 = vmatpush.bf16.msra.mxu0 %v1331
    %1362 = vmatpush.bf16.msra.mxu0 %v1329
    %1363 = vmatpush.bf16.msra.mxu0 %v1327
    %1364 = vmatpush.bf16.msra.mxu0 %v1325
    %1365 = vmatmul.bf16.gmra.mxu0 %v1254
    %v1366 = vpop.f32.mrf.mxu0
    %v1367 = vadd.f32 %v1273, %v1366
    %v1368 = vpop.f32.mrf.mxu0
    %1369 = vdwg.mxu0
    %1370 = vmatpush.bf16.msra.mxu0 %v1340
    %1371 = vmatpush.bf16.msra.mxu0 %v1338
    %1372 = vmatpush.bf16.msra.mxu0 %v1336
    %1373 = vmatpush.bf16.msra.mxu0 %v1334
    %1374 = vmatpush.bf16.msra.mxu0 %v1332
    %1375 = vmatpush.bf16.msra.mxu0 %v1330
    %1376 = vmatpush.bf16.msra.mxu0 %v1328
    %1377 = vmatpush.bf16.msra.mxu0 %v1326
    %1378 = vmatmul.bf16.gmra.mxu0 %v1254
    %v1379 = vpop.f32.mrf.mxu0
    %v1380 = vadd.f32 %v1274, %v1379
    %v1381 = vpop.f32.mrf.mxu0
    %1382 = vdwg.mxu0
    %v1383 = vmax.f32 %v1367, 0.0
    %v1384 = vmax.f32 %v1380, 0.0
    %v1385 = vpack.c.bf16 %v1383, %v1383
    %v1386 = vpack.c.bf16 %v1384, %v1384
    %v1387 = vld [vmem:[#allocation19] sm:$0xff]
    %v1388 = vld [vmem:[#allocation19 + $0x8] sm:$0xff]
    %v1389 = vld [vmem:[#allocation19 + $0x10] sm:$0xff]
    %v1390 = vld [vmem:[#allocation19 + $0x18] sm:$0xff]
    %v1391 = vld [vmem:[#allocation19 + $0x20] sm:$0xff]
    %v1392 = vld [vmem:[#allocation19 + $0x28] sm:$0xff]
    %v1393 = vld [vmem:[#allocation19 + $0x30] sm:$0xff]
    %v1394 = vld [vmem:[#allocation19 + $0x38] sm:$0xff]
    %v1395 = vld [vmem:[#allocation19 + $0x40] sm:$0xff]
    %v1396 = vld [vmem:[#allocation19 + $0x48] sm:$0xff]
    %v1397 = vld [vmem:[#allocation19 + $0x50] sm:$0xff]
    %v1398 = vld [vmem:[#allocation19 + $0x58] sm:$0xff]
    %v1399 = vld [vmem:[#allocation19 + $0x60] sm:$0xff]
    %v1400 = vld [vmem:[#allocation19 + $0x68] sm:$0xff]
    %v1401 = vld [vmem:[#allocation19 + $0x70] sm:$0xff]
    %v1402 = vld [vmem:[#allocation19 + $0x78] sm:$0xff]
    %v1403 = vld [vmem:[#allocation19 + $0x80] sm:$0xff]
    %v1404 = vld [vmem:[#allocation19 + $0x88] sm:$0xff]
    %v1405 = vld [vmem:[#allocation19 + $0x90] sm:$0xff]
    %v1406 = vld [vmem:[#allocation19 + $0x98] sm:$0xff]
    %v1407 = vld [vmem:[#allocation19 + $0xa0] sm:$0xff]
    %v1408 = vld [vmem:[#allocation19 + $0xa8] sm:$0xff]
    %v1409 = vld [vmem:[#allocation19 + $0xb0] sm:$0xff]
    %v1410 = vld [vmem:[#allocation19 + $0xb8] sm:$0xff]
    %v1411 = vld [vmem:[#allocation19 + $0xc0] sm:$0xff]
    %v1412 = vld [vmem:[#allocation19 + $0xc8] sm:$0xff]
    %v1413 = vld [vmem:[#allocation19 + $0xd0] sm:$0xff]
    %v1414 = vld [vmem:[#allocation19 + $0xd8] sm:$0xff]
    %v1415 = vld [vmem:[#allocation19 + $0xe0] sm:$0xff]
    %v1416 = vld [vmem:[#allocation19 + $0xe8] sm:$0xff]
    %v1417 = vld [vmem:[#allocation19 + $0xf0] sm:$0xff]
    %v1418 = vld [vmem:[#allocation19 + $0xf8] sm:$0xff]
    %v1419 = vld [vmem:[#allocation19 + $0x100] sm:$0xff]
    %v1420 = vld [vmem:[#allocation19 + $0x108] sm:$0xff]
    %v1421 = vld [vmem:[#allocation19 + $0x110] sm:$0xff]
    %v1422 = vld [vmem:[#allocation19 + $0x118] sm:$0xff]
    %v1423 = vld [vmem:[#allocation19 + $0x120] sm:$0xff]
    %v1424 = vld [vmem:[#allocation19 + $0x128] sm:$0xff]
    %v1425 = vld [vmem:[#allocation19 + $0x130] sm:$0xff]
    %v1426 = vld [vmem:[#allocation19 + $0x138] sm:$0xff]
    %v1427 = vld [vmem:[#allocation19 + $0x140] sm:$0xff]
    %v1428 = vld [vmem:[#allocation19 + $0x148] sm:$0xff]
    %v1429 = vld [vmem:[#allocation19 + $0x150] sm:$0xff]
    %v1430 = vld [vmem:[#allocation19 + $0x158] sm:$0xff]
    %v1431 = vld [vmem:[#allocation19 + $0x160] sm:$0xff]
    %v1432 = vld [vmem:[#allocation19 + $0x168] sm:$0xff]
    %v1433 = vld [vmem:[#allocation19 + $0x170] sm:$0xff]
    %v1434 = vld [vmem:[#allocation19 + $0x178] sm:$0xff]
    %v1435 = vld [vmem:[#allocation19 + $0x180] sm:$0xff]
    %v1436 = vld [vmem:[#allocation19 + $0x188] sm:$0xff]
    %v1437 = vld [vmem:[#allocation19 + $0x190] sm:$0xff]
    %v1438 = vld [vmem:[#allocation19 + $0x198] sm:$0xff]
    %v1439 = vld [vmem:[#allocation19 + $0x1a0] sm:$0xff]
    %v1440 = vld [vmem:[#allocation19 + $0x1a8] sm:$0xff]
    %v1441 = vld [vmem:[#allocation19 + $0x1b0] sm:$0xff]
    %v1442 = vld [vmem:[#allocation19 + $0x1b8] sm:$0xff]
    %v1443 = vld [vmem:[#allocation19 + $0x1c0] sm:$0xff]
    %v1444 = vld [vmem:[#allocation19 + $0x1c8] sm:$0xff]
    %v1445 = vld [vmem:[#allocation19 + $0x1d0] sm:$0xff]
    %v1446 = vld [vmem:[#allocation19 + $0x1d8] sm:$0xff]
    %v1447 = vld [vmem:[#allocation19 + $0x1e0] sm:$0xff]
    %v1448 = vld [vmem:[#allocation19 + $0x1e8] sm:$0xff]
    %v1449 = vld [vmem:[#allocation19 + $0x1f0] sm:$0xff]
    %v1450 = vld [vmem:[#allocation19 + $0x1f8] sm:$0xff]
    %v1451 = vld [vmem:[%s14] sm:$0xf]
    %v1453 = vperm.slane %v1451, 0
    %v1454 = vperm.slane %v1451, 1
    %v1455 = vperm.slane %v1451, 2
    %v1456 = vperm.slane %v1451, 3
    %v1525 = vunpack.c.l.b16 %v1387
    %v1526 = vunpack.c.h.b16 %v1387
    %v1527 = vunpack.c.l.b16 %v1388
    %v1528 = vunpack.c.h.b16 %v1388
    %v1529 = vunpack.c.l.b16 %v1389
    %v1530 = vunpack.c.h.b16 %v1389
    %v1531 = vunpack.c.l.b16 %v1390
    %v1532 = vunpack.c.h.b16 %v1390
    %v1533 = vunpack.c.l.b16 %v1391
    %v1534 = vunpack.c.h.b16 %v1391
    %v1535 = vunpack.c.l.b16 %v1392
    %v1536 = vunpack.c.h.b16 %v1392
    %v1537 = vunpack.c.l.b16 %v1393
    %v1538 = vunpack.c.h.b16 %v1393
    %v1539 = vunpack.c.l.b16 %v1394
    %v1540 = vunpack.c.h.b16 %v1394
    %v1541 = vunpack.c.l.b16 %v1395
    %v1542 = vunpack.c.h.b16 %v1395
    %v1543 = vunpack.c.l.b16 %v1396
    %v1544 = vunpack.c.h.b16 %v1396
    %v1545 = vunpack.c.l.b16 %v1397
    %v1546 = vunpack.c.h.b16 %v1397
    %v1547 = vunpack.c.l.b16 %v1398
    %v1548 = vunpack.c.h.b16 %v1398
    %v1549 = vunpack.c.l.b16 %v1399
    %v1550 = vunpack.c.h.b16 %v1399
    %v1551 = vunpack.c.l.b16 %v1400
    %v1552 = vunpack.c.h.b16 %v1400
    %v1553 = vunpack.c.l.b16 %v1401
    %v1554 = vunpack.c.h.b16 %v1401
    %v1555 = vunpack.c.l.b16 %v1402
    %v1556 = vunpack.c.h.b16 %v1402
    %v1557 = vunpack.c.l.b16 %v1403
    %v1558 = vunpack.c.h.b16 %v1403
    %v1559 = vunpack.c.l.b16 %v1404
    %v1560 = vunpack.c.h.b16 %v1404
    %v1561 = vunpack.c.l.b16 %v1405
    %v1562 = vunpack.c.h.b16 %v1405
    %v1563 = vunpack.c.l.b16 %v1406
    %v1564 = vunpack.c.h.b16 %v1406
    %v1565 = vunpack.c.l.b16 %v1407
    %v1566 = vunpack.c.h.b16 %v1407
    %v1567 = vunpack.c.l.b16 %v1408
    %v1568 = vunpack.c.h.b16 %v1408
    %v1569 = vunpack.c.l.b16 %v1409
    %v1570 = vunpack.c.h.b16 %v1409
    %v1571 = vunpack.c.l.b16 %v1410
    %v1572 = vunpack.c.h.b16 %v1410
    %v1573 = vunpack.c.l.b16 %v1411
    %v1574 = vunpack.c.h.b16 %v1411
    %v1575 = vunpack.c.l.b16 %v1412
    %v1576 = vunpack.c.h.b16 %v1412
    %v1577 = vunpack.c.l.b16 %v1413
    %v1578 = vunpack.c.h.b16 %v1413
    %v1579 = vunpack.c.l.b16 %v1414
    %v1580 = vunpack.c.h.b16 %v1414
    %v1581 = vunpack.c.l.b16 %v1415
    %v1582 = vunpack.c.h.b16 %v1415
    %v1583 = vunpack.c.l.b16 %v1416
    %v1584 = vunpack.c.h.b16 %v1416
    %v1585 = vunpack.c.l.b16 %v1417
    %v1586 = vunpack.c.h.b16 %v1417
    %v1587 = vunpack.c.l.b16 %v1418
    %v1588 = vunpack.c.h.b16 %v1418
    %v1589 = vunpack.c.l.b16 %v1419
    %v1590 = vunpack.c.h.b16 %v1419
    %v1591 = vunpack.c.l.b16 %v1420
    %v1592 = vunpack.c.h.b16 %v1420
    %v1593 = vunpack.c.l.b16 %v1421
    %v1594 = vunpack.c.h.b16 %v1421
    %v1595 = vunpack.c.l.b16 %v1422
    %v1596 = vunpack.c.h.b16 %v1422
    %v1597 = vunpack.c.l.b16 %v1423
    %v1598 = vunpack.c.h.b16 %v1423
    %v1599 = vunpack.c.l.b16 %v1424
    %v1600 = vunpack.c.h.b16 %v1424
    %v1601 = vunpack.c.l.b16 %v1425
    %v1602 = vunpack.c.h.b16 %v1425
    %v1603 = vunpack.c.l.b16 %v1426
    %v1604 = vunpack.c.h.b16 %v1426
    %v1605 = vunpack.c.l.b16 %v1427
    %v1606 = vunpack.c.h.b16 %v1427
    %v1607 = vunpack.c.l.b16 %v1428
    %v1608 = vunpack.c.h.b16 %v1428
    %v1609 = vunpack.c.l.b16 %v1429
    %v1610 = vunpack.c.h.b16 %v1429
    %v1611 = vunpack.c.l.b16 %v1430
    %v1612 = vunpack.c.h.b16 %v1430
    %v1613 = vunpack.c.l.b16 %v1431
    %v1614 = vunpack.c.h.b16 %v1431
    %v1615 = vunpack.c.l.b16 %v1432
    %v1616 = vunpack.c.h.b16 %v1432
    %v1617 = vunpack.c.l.b16 %v1433
    %v1618 = vunpack.c.h.b16 %v1433
    %v1619 = vunpack.c.l.b16 %v1434
    %v1620 = vunpack.c.h.b16 %v1434
    %v1621 = vunpack.c.l.b16 %v1435
    %v1622 = vunpack.c.h.b16 %v1435
    %v1623 = vunpack.c.l.b16 %v1436
    %v1624 = vunpack.c.h.b16 %v1436
    %v1625 = vunpack.c.l.b16 %v1437
    %v1626 = vunpack.c.h.b16 %v1437
    %v1627 = vunpack.c.l.b16 %v1438
    %v1628 = vunpack.c.h.b16 %v1438
    %v1629 = vunpack.c.l.b16 %v1439
    %v1630 = vunpack.c.h.b16 %v1439
    %v1631 = vunpack.c.l.b16 %v1440
    %v1632 = vunpack.c.h.b16 %v1440
    %v1633 = vunpack.c.l.b16 %v1441
    %v1634 = vunpack.c.h.b16 %v1441
    %v1635 = vunpack.c.l.b16 %v1442
    %v1636 = vunpack.c.h.b16 %v1442
    %v1637 = vunpack.c.l.b16 %v1443
    %v1638 = vunpack.c.h.b16 %v1443
    %v1639 = vunpack.c.l.b16 %v1444
    %v1640 = vunpack.c.h.b16 %v1444
    %v1641 = vunpack.c.l.b16 %v1445
    %v1642 = vunpack.c.h.b16 %v1445
    %v1643 = vunpack.c.l.b16 %v1446
    %v1644 = vunpack.c.h.b16 %v1446
    %v1645 = vunpack.c.l.b16 %v1447
    %v1646 = vunpack.c.h.b16 %v1447
    %v1647 = vunpack.c.l.b16 %v1448
    %v1648 = vunpack.c.h.b16 %v1448
    %v1649 = vunpack.c.l.b16 %v1449
    %v1650 = vunpack.c.h.b16 %v1449
    %v1651 = vunpack.c.l.b16 %v1450
    %v1652 = vunpack.c.h.b16 %v1450
    %v1653 = vpack.c.b16 %v1529, %v1525
    %v1654 = vpack.c.b16 %v1530, %v1526
    %v1655 = vpack.c.b16 %v1531, %v1527
    %v1656 = vpack.c.b16 %v1532, %v1528
    %v1657 = vpack.c.b16 %v1537, %v1533
    %v1658 = vpack.c.b16 %v1538, %v1534
    %v1659 = vpack.c.b16 %v1539, %v1535
    %v1660 = vpack.c.b16 %v1540, %v1536
    %v1661 = vpack.c.b16 %v1545, %v1541
    %v1662 = vpack.c.b16 %v1546, %v1542
    %v1663 = vpack.c.b16 %v1547, %v1543
    %v1664 = vpack.c.b16 %v1548, %v1544
    %v1665 = vpack.c.b16 %v1553, %v1549
    %v1666 = vpack.c.b16 %v1554, %v1550
    %v1667 = vpack.c.b16 %v1555, %v1551
    %v1668 = vpack.c.b16 %v1556, %v1552
    %v1669 = vpack.c.b16 %v1561, %v1557
    %v1670 = vpack.c.b16 %v1562, %v1558
    %v1671 = vpack.c.b16 %v1563, %v1559
    %v1672 = vpack.c.b16 %v1564, %v1560
    %v1673 = vpack.c.b16 %v1569, %v1565
    %v1674 = vpack.c.b16 %v1570, %v1566
    %v1675 = vpack.c.b16 %v1571, %v1567
    %v1676 = vpack.c.b16 %v1572, %v1568
    %v1677 = vpack.c.b16 %v1577, %v1573
    %v1678 = vpack.c.b16 %v1578, %v1574
    %v1679 = vpack.c.b16 %v1579, %v1575
    %v1680 = vpack.c.b16 %v1580, %v1576
    %v1681 = vpack.c.b16 %v1585, %v1581
    %v1682 = vpack.c.b16 %v1586, %v1582
    %v1683 = vpack.c.b16 %v1587, %v1583
    %v1684 = vpack.c.b16 %v1588, %v1584
    %v1685 = vpack.c.b16 %v1593, %v1589
    %v1686 = vpack.c.b16 %v1594, %v1590
    %v1687 = vpack.c.b16 %v1595, %v1591
    %v1688 = vpack.c.b16 %v1596, %v1592
    %v1689 = vpack.c.b16 %v1601, %v1597
    %v1690 = vpack.c.b16 %v1602, %v1598
    %v1691 = vpack.c.b16 %v1603, %v1599
    %v1692 = vpack.c.b16 %v1604, %v1600
    %v1693 = vpack.c.b16 %v1609, %v1605
    %v1694 = vpack.c.b16 %v1610, %v1606
    %v1695 = vpack.c.b16 %v1611, %v1607
    %v1696 = vpack.c.b16 %v1612, %v1608
    %v1697 = vpack.c.b16 %v1617, %v1613
    %v1698 = vpack.c.b16 %v1618, %v1614
    %v1699 = vpack.c.b16 %v1619, %v1615
    %v1700 = vpack.c.b16 %v1620, %v1616
    %v1701 = vpack.c.b16 %v1625, %v1621
    %v1702 = vpack.c.b16 %v1626, %v1622
    %v1703 = vpack.c.b16 %v1627, %v1623
    %v1704 = vpack.c.b16 %v1628, %v1624
    %v1705 = vpack.c.b16 %v1633, %v1629
    %v1706 = vpack.c.b16 %v1634, %v1630
    %v1707 = vpack.c.b16 %v1635, %v1631
    %v1708 = vpack.c.b16 %v1636, %v1632
    %v1709 = vpack.c.b16 %v1641, %v1637
    %v1710 = vpack.c.b16 %v1642, %v1638
    %v1711 = vpack.c.b16 %v1643, %v1639
    %v1712 = vpack.c.b16 %v1644, %v1640
    %v1713 = vpack.c.b16 %v1649, %v1645
    %v1714 = vpack.c.b16 %v1650, %v1646
    %v1715 = vpack.c.b16 %v1651, %v1647
    %v1716 = vpack.c.b16 %v1652, %v1648
    %1781 = vmatpush.bf16.msra.mxu0 %v1681
    %1782 = vmatpush.bf16.msra.mxu0 %v1677
    %1783 = vmatpush.bf16.msra.mxu0 %v1673
    %1784 = vmatpush.bf16.msra.mxu0 %v1669
    %1785 = vmatpush.bf16.msra.mxu0 %v1665
    %1786 = vmatpush.bf16.msra.mxu0 %v1661
    %1787 = vmatpush.bf16.msra.mxu0 %v1657
    %1788 = vmatpush.bf16.msra.mxu0 %v1653
    %1789 = vmatmul.bf16.gmra.mxu0 %v1385
    %v1790 = vpop.f32.mrf.mxu0
    %v1791 = vadd.f32 %v1453, %v1790
    %v1792 = vpop.f32.mrf.mxu0
    %1793 = vdwg.mxu0
    %1794 = vmatpush.bf16.msra.mxu0 %v1713
    %1795 = vmatpush.bf16.msra.mxu0 %v1709
    %1796 = vmatpush.bf16.msra.mxu0 %v1705
    %1797 = vmatpush.bf16.msra.mxu0 %v1701
    %1798 = vmatpush.bf16.msra.mxu0 %v1697
    %1799 = vmatpush.bf16.msra.mxu0 %v1693
    %1800 = vmatpush.bf16.msra.mxu0 %v1689
    %1801 = vmatpush.bf16.msra.mxu0 %v1685
    %1802 = vmatmul.bf16.gmra.mxu0 %v1386
    %v1803 = vpop.f32.mrf.mxu0
    %v1804 = vadd.f32 %v1791, %v1803
    %v1805 = vpop.f32.mrf.mxu0
    %1806 = vdwg.mxu0
    %1807 = vmatpush.bf16.msra.mxu0 %v1682
    %1808 = vmatpush.bf16.msra.mxu0 %v1678
    %1809 = vmatpush.bf16.msra.mxu0 %v1674
    %1810 = vmatpush.bf16.msra.mxu0 %v1670
    %1811 = vmatpush.bf16.msra.mxu0 %v1666
    %1812 = vmatpush.bf16.msra.mxu0 %v1662
    %1813 = vmatpush.bf16.msra.mxu0 %v1658
    %1814 = vmatpush.bf16.msra.mxu0 %v1654
    %1815 = vmatmul.bf16.gmra.mxu0 %v1385
    %v1816 = vpop.f32.mrf.mxu0
    %v1817 = vadd.f32 %v1454, %v1816
    %v1818 = vpop.f32.mrf.mxu0
    %1819 = vdwg.mxu0
    %1820 = vmatpush.bf16.msra.mxu0 %v1714
    %1821 = vmatpush.bf16.msra.mxu0 %v1710
    %1822 = vmatpush.bf16.msra.mxu0 %v1706
    %1823 = vmatpush.bf16.msra.mxu0 %v1702
    %1824 = vmatpush.bf16.msra.mxu0 %v1698
    %1825 = vmatpush.bf16.msra.mxu0 %v1694
    %1826 = vmatpush.bf16.msra.mxu0 %v1690
    %1827 = vmatpush.bf16.msra.mxu0 %v1686
    %1828 = vmatmul.bf16.gmra.mxu0 %v1386
    %v1829 = vpop.f32.mrf.mxu0
    %v1830 = vadd.f32 %v1817, %v1829
    %v1831 = vpop.f32.mrf.mxu0
    %1832 = vdwg.mxu0
    %1833 = vmatpush.bf16.msra.mxu0 %v1683
    %1834 = vmatpush.bf16.msra.mxu0 %v1679
    %1835 = vmatpush.bf16.msra.mxu0 %v1675
    %1836 = vmatpush.bf16.msra.mxu0 %v1671
    %1837 = vmatpush.bf16.msra.mxu0 %v1667
    %1838 = vmatpush.bf16.msra.mxu0 %v1663
    %1839 = vmatpush.bf16.msra.mxu0 %v1659
    %1840 = vmatpush.bf16.msra.mxu0 %v1655
    %1841 = vmatmul.bf16.gmra.mxu0 %v1385
    %v1842 = vpop.f32.mrf.mxu0
    %v1843 = vadd.f32 %v1455, %v1842
    %v1844 = vpop.f32.mrf.mxu0
    %1845 = vdwg.mxu0
    %1846 = vmatpush.bf16.msra.mxu0 %v1715
    %1847 = vmatpush.bf16.msra.mxu0 %v1711
    %1848 = vmatpush.bf16.msra.mxu0 %v1707
    %1849 = vmatpush.bf16.msra.mxu0 %v1703
    %1850 = vmatpush.bf16.msra.mxu0 %v1699
    %1851 = vmatpush.bf16.msra.mxu0 %v1695
    %1852 = vmatpush.bf16.msra.mxu0 %v1691
    %1853 = vmatpush.bf16.msra.mxu0 %v1687
    %1854 = vmatmul.bf16.gmra.mxu0 %v1386
    %v1855 = vpop.f32.mrf.mxu0
    %v1856 = vadd.f32 %v1843, %v1855
    %v1857 = vpop.f32.mrf.mxu0
    %1858 = vdwg.mxu0
    %1859 = vmatpush.bf16.msra.mxu0 %v1684
    %1860 = vmatpush.bf16.msra.mxu0 %v1680
    %1861 = vmatpush.bf16.msra.mxu0 %v1676
    %1862 = vmatpush.bf16.msra.mxu0 %v1672
    %1863 = vmatpush.bf16.msra.mxu0 %v1668
    %1864 = vmatpush.bf16.msra.mxu0 %v1664
    %1865 = vmatpush.bf16.msra.mxu0 %v1660
    %1866 = vmatpush.bf16.msra.mxu0 %v1656
    %1867 = vmatmul.bf16.gmra.mxu0 %v1385
    %v1868 = vpop.f32.mrf.mxu0
    %v1869 = vadd.f32 %v1456, %v1868
    %v1870 = vpop.f32.mrf.mxu0
    %1871 = vdwg.mxu0
    %1872 = vmatpush.bf16.msra.mxu0 %v1716
    %1873 = vmatpush.bf16.msra.mxu0 %v1712
    %1874 = vmatpush.bf16.msra.mxu0 %v1708
    %1875 = vmatpush.bf16.msra.mxu0 %v1704
    %1876 = vmatpush.bf16.msra.mxu0 %v1700
    %1877 = vmatpush.bf16.msra.mxu0 %v1696
    %1878 = vmatpush.bf16.msra.mxu0 %v1692
    %1879 = vmatpush.bf16.msra.mxu0 %v1688
    %1880 = vmatmul.bf16.gmra.mxu0 %v1386
    %v1881 = vpop.f32.mrf.mxu0
    %v1882 = vadd.f32 %v1869, %v1881
    %v1883 = vpop.f32.mrf.mxu0
    %1884 = vdwg.mxu0
    %v1885 = vmax.f32 %v1804, 0.0
    %v1886 = vmax.f32 %v1830, 0.0
    %v1887 = vmax.f32 %v1856, 0.0
    %v1888 = vmax.f32 %v1882, 0.0
    %v1889 = vpack.c.bf16 %v1885, %v1885
    %v1890 = vpack.c.bf16 %v1886, %v1886
    %v1891 = vpack.c.bf16 %v1887, %v1887
    %v1892 = vpack.c.bf16 %v1888, %v1888
    %v1893 = vld [vmem:[#allocation20] sm:$0xf]
    %v1894 = vld [vmem:[#allocation20 + $0x4] sm:$0xf]
    %v1895 = vld [vmem:[#allocation20 + $0x8] sm:$0xf]
    %v1896 = vld [vmem:[#allocation20 + $0xc] sm:$0xf]
    %v1897 = vld [vmem:[#allocation20 + $0x10] sm:$0xf]
    %v1898 = vld [vmem:[#allocation20 + $0x14] sm:$0xf]
    %v1899 = vld [vmem:[#allocation20 + $0x18] sm:$0xf]
    %v1900 = vld [vmem:[#allocation20 + $0x1c] sm:$0xf]
    %v1901 = vld [vmem:[#allocation20 + $0x20] sm:$0xf]
    %v1902 = vld [vmem:[#allocation20 + $0x24] sm:$0xf]
    %v1903 = vld [vmem:[#allocation20 + $0x28] sm:$0xf]
    %v1904 = vld [vmem:[#allocation20 + $0x2c] sm:$0xf]
    %v1905 = vld [vmem:[#allocation20 + $0x30] sm:$0xf]
    %v1906 = vld [vmem:[#allocation20 + $0x34] sm:$0xf]
    %v1907 = vld [vmem:[#allocation20 + $0x38] sm:$0xf]
    %v1908 = vld [vmem:[#allocation20 + $0x3c] sm:$0xf]
    %v1909 = vld [vmem:[#allocation20 + $0x40] sm:$0xf]
    %v1910 = vld [vmem:[#allocation20 + $0x44] sm:$0xf]
    %v1911 = vld [vmem:[#allocation20 + $0x48] sm:$0xf]
    %v1912 = vld [vmem:[#allocation20 + $0x4c] sm:$0xf]
    %v1913 = vld [vmem:[#allocation20 + $0x50] sm:$0xf]
    %v1914 = vld [vmem:[#allocation20 + $0x54] sm:$0xf]
    %v1915 = vld [vmem:[#allocation20 + $0x58] sm:$0xf]
    %v1916 = vld [vmem:[#allocation20 + $0x5c] sm:$0xf]
    %v1917 = vld [vmem:[#allocation20 + $0x60] sm:$0xf]
    %v1918 = vld [vmem:[#allocation20 + $0x64] sm:$0xf]
    %v1919 = vld [vmem:[#allocation20 + $0x68] sm:$0xf]
    %v1920 = vld [vmem:[#allocation20 + $0x6c] sm:$0xf]
    %v1921 = vld [vmem:[#allocation20 + $0x70] sm:$0xf]
    %v1922 = vld [vmem:[#allocation20 + $0x74] sm:$0xf]
    %v1923 = vld [vmem:[#allocation20 + $0x78] sm:$0xf]
    %v1924 = vld [vmem:[#allocation20 + $0x7c] sm:$0xf]
    %v1925 = vld [vmem:[#allocation20 + $0x80] sm:$0xf]
    %v1926 = vld [vmem:[#allocation20 + $0x84] sm:$0xf]
    %v1927 = vld [vmem:[#allocation20 + $0x88] sm:$0xf]
    %v1928 = vld [vmem:[#allocation20 + $0x8c] sm:$0xf]
    %v1929 = vld [vmem:[#allocation20 + $0x90] sm:$0xf]
    %v1930 = vld [vmem:[#allocation20 + $0x94] sm:$0xf]
    %v1931 = vld [vmem:[#allocation20 + $0x98] sm:$0xf]
    %v1932 = vld [vmem:[#allocation20 + $0x9c] sm:$0xf]
    %v1933 = vld [vmem:[#allocation20 + $0xa0] sm:$0xf]
    %v1934 = vld [vmem:[#allocation20 + $0xa4] sm:$0xf]
    %v1935 = vld [vmem:[#allocation20 + $0xa8] sm:$0xf]
    %v1936 = vld [vmem:[#allocation20 + $0xac] sm:$0xf]
    %v1937 = vld [vmem:[#allocation20 + $0xb0] sm:$0xf]
    %v1938 = vld [vmem:[#allocation20 + $0xb4] sm:$0xf]
    %v1939 = vld [vmem:[#allocation20 + $0xb8] sm:$0xf]
    %v1940 = vld [vmem:[#allocation20 + $0xbc] sm:$0xf]
    %v1941 = vld [vmem:[#allocation20 + $0xc0] sm:$0xf]
    %v1942 = vld [vmem:[#allocation20 + $0xc4] sm:$0xf]
    %v1943 = vld [vmem:[#allocation20 + $0xc8] sm:$0xf]
    %v1944 = vld [vmem:[#allocation20 + $0xcc] sm:$0xf]
    %v1945 = vld [vmem:[#allocation20 + $0xd0] sm:$0xf]
    %v1946 = vld [vmem:[#allocation20 + $0xd4] sm:$0xf]
    %v1947 = vld [vmem:[#allocation20 + $0xd8] sm:$0xf]
    %v1948 = vld [vmem:[#allocation20 + $0xdc] sm:$0xf]
    %v1949 = vld [vmem:[#allocation20 + $0xe0] sm:$0xf]
    %v1950 = vld [vmem:[#allocation20 + $0xe4] sm:$0xf]
    %v1951 = vld [vmem:[#allocation20 + $0xe8] sm:$0xf]
    %v1952 = vld [vmem:[#allocation20 + $0xec] sm:$0xf]
    %v1953 = vld [vmem:[#allocation20 + $0xf0] sm:$0xf]
    %v1954 = vld [vmem:[#allocation20 + $0xf4] sm:$0xf]
    %v1955 = vld [vmem:[#allocation20 + $0xf8] sm:$0xf]
    %v1956 = vld [vmem:[#allocation20 + $0xfc] sm:$0xf]
    %v1957 = vld [vmem:[%s16] sm:$0x1]
    %v1959 = vperm.slane %v1957, 0
    %v2025 = vunpack.c.l.b16 %v1893
    %v2026 = vunpack.c.l.b16 %v1894
    %v2027 = vunpack.c.l.b16 %v1895
    %v2028 = vunpack.c.l.b16 %v1896
    %v2029 = vunpack.c.l.b16 %v1897
    %v2030 = vunpack.c.l.b16 %v1898
    %v2031 = vunpack.c.l.b16 %v1899
    %v2032 = vunpack.c.l.b16 %v1900
    %v2033 = vunpack.c.l.b16 %v1901
    %v2034 = vunpack.c.l.b16 %v1902
    %v2035 = vunpack.c.l.b16 %v1903
    %v2036 = vunpack.c.l.b16 %v1904
    %v2037 = vunpack.c.l.b16 %v1905
    %v2038 = vunpack.c.l.b16 %v1906
    %v2039 = vunpack.c.l.b16 %v1907
    %v2040 = vunpack.c.l.b16 %v1908
    %v2041 = vunpack.c.l.b16 %v1909
    %v2042 = vunpack.c.l.b16 %v1910
    %v2043 = vunpack.c.l.b16 %v1911
    %v2044 = vunpack.c.l.b16 %v1912
    %v2045 = vunpack.c.l.b16 %v1913
    %v2046 = vunpack.c.l.b16 %v1914
    %v2047 = vunpack.c.l.b16 %v1915
    %v2048 = vunpack.c.l.b16 %v1916
    %v2049 = vunpack.c.l.b16 %v1917
    %v2050 = vunpack.c.l.b16 %v1918
    %v2051 = vunpack.c.l.b16 %v1919
    %v2052 = vunpack.c.l.b16 %v1920
    %v2053 = vunpack.c.l.b16 %v1921
    %v2054 = vunpack.c.l.b16 %v1922
    %v2055 = vunpack.c.l.b16 %v1923
    %v2056 = vunpack.c.l.b16 %v1924
    %v2057 = vunpack.c.l.b16 %v1925
    %v2058 = vunpack.c.l.b16 %v1926
    %v2059 = vunpack.c.l.b16 %v1927
    %v2060 = vunpack.c.l.b16 %v1928
    %v2061 = vunpack.c.l.b16 %v1929
    %v2062 = vunpack.c.l.b16 %v1930
    %v2063 = vunpack.c.l.b16 %v1931
    %v2064 = vunpack.c.l.b16 %v1932
    %v2065 = vunpack.c.l.b16 %v1933
    %v2066 = vunpack.c.l.b16 %v1934
    %v2067 = vunpack.c.l.b16 %v1935
    %v2068 = vunpack.c.l.b16 %v1936
    %v2069 = vunpack.c.l.b16 %v1937
    %v2070 = vunpack.c.l.b16 %v1938
    %v2071 = vunpack.c.l.b16 %v1939
    %v2072 = vunpack.c.l.b16 %v1940
    %v2073 = vunpack.c.l.b16 %v1941
    %v2074 = vunpack.c.l.b16 %v1942
    %v2075 = vunpack.c.l.b16 %v1943
    %v2076 = vunpack.c.l.b16 %v1944
    %v2077 = vunpack.c.l.b16 %v1945
    %v2078 = vunpack.c.l.b16 %v1946
    %v2079 = vunpack.c.l.b16 %v1947
    %v2080 = vunpack.c.l.b16 %v1948
    %v2081 = vunpack.c.l.b16 %v1949
    %v2082 = vunpack.c.l.b16 %v1950
    %v2083 = vunpack.c.l.b16 %v1951
    %v2084 = vunpack.c.l.b16 %v1952
    %v2085 = vunpack.c.l.b16 %v1953
    %v2086 = vunpack.c.l.b16 %v1954
    %v2087 = vunpack.c.l.b16 %v1955
    %v2088 = vunpack.c.l.b16 %v1956
    %v2089 = vpack.c.b16 %v2026, %v2025
    %v2090 = vpack.c.b16 %v2028, %v2027
    %v2091 = vpack.c.b16 %v2030, %v2029
    %v2092 = vpack.c.b16 %v2032, %v2031
    %v2093 = vpack.c.b16 %v2034, %v2033
    %v2094 = vpack.c.b16 %v2036, %v2035
    %v2095 = vpack.c.b16 %v2038, %v2037
    %v2096 = vpack.c.b16 %v2040, %v2039
    %v2097 = vpack.c.b16 %v2042, %v2041
    %v2098 = vpack.c.b16 %v2044, %v2043
    %v2099 = vpack.c.b16 %v2046, %v2045
    %v2100 = vpack.c.b16 %v2048, %v2047
    %v2101 = vpack.c.b16 %v2050, %v2049
    %v2102 = vpack.c.b16 %v2052, %v2051
    %v2103 = vpack.c.b16 %v2054, %v2053
    %v2104 = vpack.c.b16 %v2056, %v2055
    %v2105 = vpack.c.b16 %v2058, %v2057
    %v2106 = vpack.c.b16 %v2060, %v2059
    %v2107 = vpack.c.b16 %v2062, %v2061
    %v2108 = vpack.c.b16 %v2064, %v2063
    %v2109 = vpack.c.b16 %v2066, %v2065
    %v2110 = vpack.c.b16 %v2068, %v2067
    %v2111 = vpack.c.b16 %v2070, %v2069
    %v2112 = vpack.c.b16 %v2072, %v2071
    %v2113 = vpack.c.b16 %v2074, %v2073
    %v2114 = vpack.c.b16 %v2076, %v2075
    %v2115 = vpack.c.b16 %v2078, %v2077
    %v2116 = vpack.c.b16 %v2080, %v2079
    %v2117 = vpack.c.b16 %v2082, %v2081
    %v2118 = vpack.c.b16 %v2084, %v2083
    %v2119 = vpack.c.b16 %v2086, %v2085
    %v2120 = vpack.c.b16 %v2088, %v2087
    %2153 = vmatpush.bf16.msra.mxu0 %v2096
    %2154 = vmatpush.bf16.msra.mxu0 %v2095
    %2155 = vmatpush.bf16.msra.mxu0 %v2094
    %2156 = vmatpush.bf16.msra.mxu0 %v2093
    %2157 = vmatpush.bf16.msra.mxu0 %v2092
    %2158 = vmatpush.bf16.msra.mxu0 %v2091
    %2159 = vmatpush.bf16.msra.mxu0 %v2090
    %2160 = vmatpush.bf16.msra.mxu0 %v2089
    %2161 = vmatmul.bf16.gmra.mxu0 %v1889
    %v2162 = vpop.f32.mrf.mxu0
    %v2163 = vadd.f32 %v1959, %v2162
    %v2164 = vpop.f32.mrf.mxu0
    %2165 = vdwg.mxu0
    %2166 = vmatpush.bf16.msra.mxu0 %v2104
    %2167 = vmatpush.bf16.msra.mxu0 %v2103
    %2168 = vmatpush.bf16.msra.mxu0 %v2102
    %2169 = vmatpush.bf16.msra.mxu0 %v2101
    %2170 = vmatpush.bf16.msra.mxu0 %v2100
    %2171 = vmatpush.bf16.msra.mxu0 %v2099
    %2172 = vmatpush.bf16.msra.mxu0 %v2098
    %2173 = vmatpush.bf16.msra.mxu0 %v2097
    %2174 = vmatmul.bf16.gmra.mxu0 %v1890
    %v2175 = vpop.f32.mrf.mxu0
    %v2176 = vadd.f32 %v2163, %v2175
    %v2177 = vpop.f32.mrf.mxu0
    %2178 = vdwg.mxu0
    %2179 = vmatpush.bf16.msra.mxu0 %v2112
    %2180 = vmatpush.bf16.msra.mxu0 %v2111
    %2181 = vmatpush.bf16.msra.mxu0 %v2110
    %2182 = vmatpush.bf16.msra.mxu0 %v2109
    %2183 = vmatpush.bf16.msra.mxu0 %v2108
    %2184 = vmatpush.bf16.msra.mxu0 %v2107
    %2185 = vmatpush.bf16.msra.mxu0 %v2106
    %2186 = vmatpush.bf16.msra.mxu0 %v2105
    %2187 = vmatmul.bf16.gmra.mxu0 %v1891
    %v2188 = vpop.f32.mrf.mxu0
    %v2189 = vadd.f32 %v2176, %v2188
    %v2190 = vpop.f32.mrf.mxu0
    %2191 = vdwg.mxu0
    %2192 = vmatpush.bf16.msra.mxu0 %v2120
    %2193 = vmatpush.bf16.msra.mxu0 %v2119
    %2194 = vmatpush.bf16.msra.mxu0 %v2118
    %2195 = vmatpush.bf16.msra.mxu0 %v2117
    %2196 = vmatpush.bf16.msra.mxu0 %v2116
    %2197 = vmatpush.bf16.msra.mxu0 %v2115
    %2198 = vmatpush.bf16.msra.mxu0 %v2114
    %2199 = vmatpush.bf16.msra.mxu0 %v2113
    %2200 = vmatmul.bf16.gmra.mxu0 %v1892
    %v2201 = vpop.f32.mrf.mxu0
    %v2202 = vadd.f32 %v2189, %v2201
    %v2203 = vpop.f32.mrf.mxu0
    %2204 = vdwg.mxu0
    %v2205 = vpack.c.bf16 %v1253, %v1253
    %v2206 = vld [vmem:[#allocation22] sm:$0xf]
    %v2207 = vld [vmem:[#allocation22 + $0x4] sm:$0xf]
    %v2208 = vld [vmem:[#allocation22 + $0x8] sm:$0xf]
    %v2209 = vld [vmem:[#allocation22 + $0xc] sm:$0xf]
    %v2210 = vld [vmem:[#allocation22 + $0x10] sm:$0xf]
    %v2211 = vld [vmem:[#allocation22 + $0x14] sm:$0xf]
    %v2212 = vld [vmem:[#allocation22 + $0x18] sm:$0xf]
    %v2213 = vld [vmem:[#allocation22 + $0x1c] sm:$0xf]
    %v2214 = vld [vmem:[#allocation22 + $0x20] sm:$0xf]
    %v2215 = vld [vmem:[#allocation22 + $0x24] sm:$0xf]
    %v2216 = vld [vmem:[#allocation22 + $0x28] sm:$0xf]
    %v2217 = vld [vmem:[#allocation22 + $0x2c] sm:$0xf]
    %v2218 = vld [vmem:[#allocation22 + $0x30] sm:$0xf]
    %v2219 = vld [vmem:[#allocation22 + $0x34] sm:$0xf]
    %v2220 = vld [vmem:[#allocation22 + $0x38] sm:$0xf]
    %v2221 = vld [vmem:[#allocation22 + $0x3c] sm:$0xf]
    %v2222 = vld [vmem:[%s18] sm:$0x1]
    %v2224 = vperm.slane %v2222, 0
    %v2242 = vunpack.c.l.b16 %v2206
    %v2243 = vunpack.c.l.b16 %v2207
    %v2244 = vunpack.c.l.b16 %v2208
    %v2245 = vunpack.c.l.b16 %v2209
    %v2246 = vunpack.c.l.b16 %v2210
    %v2247 = vunpack.c.l.b16 %v2211
    %v2248 = vunpack.c.l.b16 %v2212
    %v2249 = vunpack.c.l.b16 %v2213
    %v2250 = vunpack.c.l.b16 %v2214
    %v2251 = vunpack.c.l.b16 %v2215
    %v2252 = vunpack.c.l.b16 %v2216
    %v2253 = vunpack.c.l.b16 %v2217
    %v2254 = vunpack.c.l.b16 %v2218
    %v2255 = vunpack.c.l.b16 %v2219
    %v2256 = vunpack.c.l.b16 %v2220
    %v2257 = vunpack.c.l.b16 %v2221
    %v2258 = vpack.c.b16 %v2243, %v2242
    %v2259 = vpack.c.b16 %v2245, %v2244
    %v2260 = vpack.c.b16 %v2247, %v2246
    %v2261 = vpack.c.b16 %v2249, %v2248
    %v2262 = vpack.c.b16 %v2251, %v2250
    %v2263 = vpack.c.b16 %v2253, %v2252
    %v2264 = vpack.c.b16 %v2255, %v2254
    %v2265 = vpack.c.b16 %v2257, %v2256
    %2274 = vmatpush.bf16.msra.mxu0 %v2265
    %2275 = vmatpush.bf16.msra.mxu0 %v2264
    %2276 = vmatpush.bf16.msra.mxu0 %v2263
    %2277 = vmatpush.bf16.msra.mxu0 %v2262
    %2278 = vmatpush.bf16.msra.mxu0 %v2261
    %2279 = vmatpush.bf16.msra.mxu0 %v2260
    %2280 = vmatpush.bf16.msra.mxu0 %v2259
    %2281 = vmatpush.bf16.msra.mxu0 %v2258
    %2282 = vmatmul.bf16.gmra.mxu0 %v2205
    %v2283 = vpop.f32.mrf.mxu0
    %v2284 = vadd.f32 %v2224, %v2283
    %v2285 = vpop.f32.mrf.mxu0
    %2286 = vdwg.mxu0
    %2287 = vst [vmem:[#allocation23] sm:$0xff] %v2202
    %2288 = vst [vmem:[%s20] sm:$0xff] %v1120
    %2289 = vst [vmem:[%s20 + $0x8] sm:$0xff] %v2284
    // Predicated region
    $region130: #{dual_output_autoencoder_forward.1} parent=1 // pred_check
      _
    $region131: #{dual_output_autoencoder_forward.1} parent=1 // pred_check_branch
      %2291 = sbr.rel (0) target = $region133
    $region132: #{dual_output_autoencoder_forward.1} parent=1 // pred_region
      %2293 = vsyncadd [#allocation4], 0
      %s2295 = sshll.u32 [#allocation23], 4
      %s2296 = int_to_ptr.vmem [resolvable:$true] %s2295
      %s2297 = sshll.u32 %s19, 4
      %s2298 = int_to_ptr.hbm [resolvable:$true] %s2297
      %2300 = dma.vmem_to_hbm [thread:$0]  %s2296, 128, %s2298, [#allocation4]
    $region133: #{dual_output_autoencoder_forward.1} parent=1 // pred_fallthru
      _
    // Predicated region
    $region134: #{dual_output_autoencoder_forward.1} parent=1 // pred_check
      _
    $region135: #{dual_output_autoencoder_forward.1} parent=1 // pred_check_branch
      %2302 = sbr.rel (0) target = $region137
    $region136: #{dual_output_autoencoder_forward.1} parent=1 // pred_region
      _
    $region137: #{dual_output_autoencoder_forward.1} parent=1 // pred_fallthru
      _
    // Predicated region
    $region138: #{dual_output_autoencoder_forward.1} parent=1 // pred_check
      _
    $region139: #{dual_output_autoencoder_forward.1} parent=1 // pred_check_branch
      %2304 = sbr.rel (0) target = $region141
    $region140: #{dual_output_autoencoder_forward.1} parent=1 // pred_region
      %2306 = dma.done [#allocation4], 128
    $region141: #{dual_output_autoencoder_forward.1} parent=1 // pred_fallthru
      _
    // Predicated region
    $region142: #{dual_output_autoencoder_forward.1} parent=1 // pred_check
      _
    $region143: #{dual_output_autoencoder_forward.1} parent=1 // pred_check_branch
      %2308 = sbr.rel (0) target = $region145
    $region144: #{dual_output_autoencoder_forward.1} parent=1 // pred_region
      _
    $region145: #{dual_output_autoencoder_forward.1} parent=1 // pred_fallthru
      _
    %2309 = vsyncpa [#allocation3], 1
    %2310 = vsyncpa [#allocation6], 1
    %2311 = vsyncpa [#allocation9], 1
    %2312 = vsyncpa [#allocation12], 1
    %2313 = vsyncpa [#allocation15], 1
    %2314 = vsyncpa [#allocation18], 1
    %2315 = vsyncpa [#allocation21], 1
    %2316 = vsyncpa [#allocation4], 1

</llo_original>
